<compile_context>
chip_gen: v7x
topology: tpu7x:2x2x1
jax: 0.10.0
libtpu: 0.0.40
codegen_flags: <defaults>
</compile_context>

<pallas_src>
import functools

import jax
import jax.numpy as jnp
from jax.experimental import pallas as pl
from jax.experimental.pallas import tpu as pltpu


def _head_kernel(ed_ref, ec_ref, w1d_ref, w1c_ref, b1_ref, w2_ref, b2_ref,
                 out_ref, *, min_score: float, max_score: float):
    # First linear: split-weight form of cat([ed, ec], -1) @ W1^T + b1.
    h = jnp.dot(ed_ref[...], w1d_ref[...], preferred_element_type=jnp.float32)
    h = h + jnp.dot(ec_ref[...], w1c_ref[...],
                    preferred_element_type=jnp.float32)
    h = jnp.tanh(h + b1_ref[...])                      # f32 (v5e-safe)
    # (dropout: identity in eval mode)
    # Second linear: (TB, D2) @ (D2, 2) + b2 — tiny, kept in f32.
    o = jnp.dot(h, w2_ref[...], preferred_element_type=jnp.float32)
    o = o + b2_ref[...]
    out = jax.nn.sigmoid(o) * (max_score - min_score) + min_score
    out_ref[...] = out.astype(out_ref.dtype)


def prepare_params(params, *, classifier_embed_dim,
                   compute_dtype=jnp.bfloat16):
    """One-time parameter prep: transpose/split/reshape + cast.

    PyTorch Linear stores weight as (out, in); we pre-transpose to (in, out)
    and split W1 into its ed-part and ec-part so the kernel needs no concat.
    """
    D1 = classifier_embed_dim
    w1_t = params["w1"].T                              # (D1+D2, D2)
    D2 = w1_t.shape[1]
    return {
        "w1d": w1_t[:D1, :].astype(compute_dtype),     # (D1, D2)
        "w1c": w1_t[D1:, :].astype(compute_dtype),     # (D2, D2)
        "b1": params["b1"].reshape(1, D2).astype(jnp.float32),
        "w2t": params["w2"].T.astype(jnp.float32),     # (D2, 2)
        "b2": params["b2"].reshape(1, 2).astype(jnp.float32),
    }


def hierarchical_dc_regression_head(ed, ec, prepared, *,
                                    min_score=0.0, max_score=1.0,
                                    block_b=512):
    """ed: (B, D1), ec: (B, D2) -> (B, 2) float32."""
    B, D1 = ed.shape
    _, D2 = ec.shape
    w1d, w1c = prepared["w1d"], prepared["w1c"]
    b1, w2t, b2 = prepared["b1"], prepared["w2t"], prepared["b2"]

    # Activations stream in the same dtype as the first-layer weights
    # (bf16 halves HBM traffic in the memory-bound regime on v6e/v7x).
    cdt = w1d.dtype
    ed = ed.astype(cdt)
    ec = ec.astype(cdt)

    # Batch tile: multiple of 8 sublanes; 2 pipeline buffers of the ed/ec
    # streams at this size stay far below v7x's 64 MiB VMEM.
    if B >= 8:
        tb = min(block_b, B)
        tb = max(8, (tb // 8) * 8)
    else:
        tb = B                                        # block == full dim
    grid = (pl.cdiv(B, tb),)

    itemsize = jnp.dtype(cdt).itemsize
    flops = 2 * B * (D1 + D2) * D2 + 2 * B * D2 * 2 + 6 * B * 2
    transcendentals = B * D2 + B * 2                  # tanh + sigmoid
    bytes_accessed = (B * (D1 + D2) * itemsize
                      + (D1 + D2) * D2 * itemsize
                      + (D2 + D2 * 2 + 2) * 4
                      + B * 2 * 4)

    kernel = functools.partial(_head_kernel,
                               min_score=float(min_score),
                               max_score=float(max_score))

    return pl.pallas_call(
        kernel,
        out_shape=jax.ShapeDtypeStruct((B, 2), jnp.float32),
        grid=grid,
        in_specs=[
            pl.BlockSpec((tb, D1), lambda i: (i, 0)),   # ed  (streamed)
            pl.BlockSpec((tb, D2), lambda i: (i, 0)),   # ec  (streamed)
            pl.BlockSpec((D1, D2), lambda i: (0, 0)),   # W1[:D1].T (resident)
            pl.BlockSpec((D2, D2), lambda i: (0, 0)),   # W1[D1:].T (resident)
            pl.BlockSpec((1, D2), lambda i: (0, 0)),    # b1
            pl.BlockSpec((D2, 2), lambda i: (0, 0)),    # W2.T
            pl.BlockSpec((1, 2), lambda i: (0, 0)),     # b2
        ],
        out_specs=pl.BlockSpec((tb, 2), lambda i: (i, 0)),
        compiler_params=pltpu.CompilerParams(
            dimension_semantics=("parallel",)),
        cost_estimate=pl.CostEstimate(flops=flops,
                                      transcendentals=transcendentals,
                                      bytes_accessed=bytes_accessed),
    )(ed, ec, w1d, w1c, b1, w2t, b2)


def init_params(key, classifier_embed_dim, cont_embed_dim):
    """Deterministic init mimicking nn.Linear's uniform(-1/sqrt(fan_in), ...)."""
    k1, k2, k3, k4 = jax.random.split(key, 4)
    d_in1 = classifier_embed_dim + cont_embed_dim
    bound1 = 1.0 / jnp.sqrt(d_in1)
    bound2 = 1.0 / jnp.sqrt(cont_embed_dim)
    return {
        "w1": jax.random.uniform(k1, (cont_embed_dim, d_in1), jnp.float32,
                                 -bound1, bound1),
        "b1": jax.random.uniform(k2, (cont_embed_dim,), jnp.float32,
                                 -bound1, bound1),
        "w2": jax.random.uniform(k3, (2, cont_embed_dim), jnp.float32,
                                 -bound2, bound2),
        "b2": jax.random.uniform(k4, (2,), jnp.float32, -bound2, bound2),
    }


def _reference(ed, ec, params, min_score=0.0, max_score=1.0):
    x = jnp.concatenate([ed, ec], axis=-1)
    h = jnp.tanh(x @ params["w1"].T + params["b1"])
    o = h @ params["w2"].T + params["b2"]
    return jax.nn.sigmoid(o) * (max_score - min_score) + min_score


if __name__ == "__main__":
    B = 1024                   # small but enough to exercise the 2-step grid
    classifier_embed_dim = 32  # D1
    cont_embed_dim = 32        # D2

    key = jax.random.PRNGKey(0)
    k_ed, k_ec, k_p = jax.random.split(key, 3)
    ed = jax.random.normal(k_ed, (B, classifier_embed_dim), jnp.float32)
    ec = jax.random.normal(k_ec, (B, cont_embed_dim), jnp.float32)
    params = init_params(k_p, classifier_embed_dim, cont_embed_dim)
    ref = _reference(ed, ec, params)

    # f32 compute path: must match the reference tightly.
    prep_f32 = prepare_params(params, classifier_embed_dim=classifier_embed_dim,
                              compute_dtype=jnp.float32)
    out_f32 = jax.block_until_ready(
        hierarchical_dc_regression_head(ed, ec, prep_f32,
                                        min_score=0.0, max_score=1.0))
    assert out_f32.shape == (B, 2), out_f32.shape
    assert jnp.allclose(out_f32, ref, atol=1e-5, rtol=1e-5)

    # bf16 streaming path (default; halves HBM bytes on v6e/v7x), f32 accum.
    prep_bf16 = prepare_params(params,
                               classifier_embed_dim=classifier_embed_dim,
                               compute_dtype=jnp.bfloat16)
    out_bf16 = jax.block_until_ready(
        hierarchical_dc_regression_head(ed, ec, prep_bf16,
                                        min_score=0.0, max_score=1.0))
    assert out_bf16.shape == (B, 2), out_bf16.shape
    assert jnp.allclose(out_bf16, ref, atol=3e-2, rtol=3e-2)

    print("KERNEL_OK")
</pallas_src>

<mosaic_0001>
module attributes {stable_mosaic.version = 11 : i64} {
  func.func @_head_kernel(%arg0: i32, %arg1: memref<512x32xf32, #tpu.memory_space<vmem>>, %arg2: memref<512x32xf32, #tpu.memory_space<vmem>>, %arg3: memref<32x32xf32, #tpu.memory_space<vmem>>, %arg4: memref<32x32xf32, #tpu.memory_space<vmem>>, %arg5: memref<1x32xf32, #tpu.memory_space<vmem>>, %arg6: memref<32x2xf32, #tpu.memory_space<vmem>>, %arg7: memref<1x2xf32, #tpu.memory_space<vmem>>, %arg8: memref<512x2xf32, #tpu.memory_space<vmem>>) attributes {dimension_semantics = [#tpu.dimension_semantics<parallel>], iteration_bounds = array<i64: 2>, scalar_prefetch = 0 : i64, scratch_operands = 0 : i64, tpu.core_type = #tpu.core_type<tc>, window_params = [{transform_indices = @transform_0, window_bounds = array<i64: 512, 32>}, {transform_indices = @transform_1, window_bounds = array<i64: 512, 32>}, {pipeline_mode = #tpu.pipeline_mode<synchronous>, transform_indices = @transform_2, window_bounds = array<i64: 32, 32>}, {pipeline_mode = #tpu.pipeline_mode<synchronous>, transform_indices = @transform_3, window_bounds = array<i64: 32, 32>}, {pipeline_mode = #tpu.pipeline_mode<synchronous>, transform_indices = @transform_4, window_bounds = array<i64: 1, 32>}, {pipeline_mode = #tpu.pipeline_mode<synchronous>, transform_indices = @transform_5, window_bounds = array<i64: 32, 2>}, {pipeline_mode = #tpu.pipeline_mode<synchronous>, transform_indices = @transform_6, window_bounds = array<i64: 1, 2>}, {transform_indices = @transform_7, window_bounds = array<i64: 512, 2>}]} {
    %c0 = arith.constant 0 : index
    %c0_0 = arith.constant 0 : index
    %0 = vector.load %arg1[%c0, %c0_0] : memref<512x32xf32, #tpu.memory_space<vmem>>, vector<512x32xf32>
    %c0_1 = arith.constant 0 : index
    %c0_2 = arith.constant 0 : index
    %1 = vector.load %arg3[%c0_1, %c0_2] : memref<32x32xf32, #tpu.memory_space<vmem>>, vector<32x32xf32>
    %cst = arith.constant dense<0.000000e+00> : vector<512x32xf32>
    %2 = tpu.matmul %0, %1, %cst {dimension_numbers = #tpu.dot_dimension_numbers<[1], [0], [0], [1], [0, 0, 1, 1], [], []>} : vector<512x32xf32>, vector<32x32xf32>, vector<512x32xf32> -> vector<512x32xf32>
    %c0_3 = arith.constant 0 : index
    %c0_4 = arith.constant 0 : index
    %3 = vector.load %arg2[%c0_3, %c0_4] : memref<512x32xf32, #tpu.memory_space<vmem>>, vector<512x32xf32>
    %c0_5 = arith.constant 0 : index
    %c0_6 = arith.constant 0 : index
    %4 = vector.load %arg4[%c0_5, %c0_6] : memref<32x32xf32, #tpu.memory_space<vmem>>, vector<32x32xf32>
    %cst_7 = arith.constant dense<0.000000e+00> : vector<512x32xf32>
    %5 = tpu.matmul %3, %4, %cst_7 {dimension_numbers = #tpu.dot_dimension_numbers<[1], [0], [0], [1], [0, 0, 1, 1], [], []>} : vector<512x32xf32>, vector<32x32xf32>, vector<512x32xf32> -> vector<512x32xf32>
    %6 = arith.addf %2, %5 : vector<512x32xf32>
    %c0_8 = arith.constant 0 : index
    %c0_9 = arith.constant 0 : index
    %7 = vector.load %arg5[%c0_8, %c0_9] : memref<1x32xf32, #tpu.memory_space<vmem>>, vector<1x32xf32>
    %8 = vector.broadcast %7 : vector<1x32xf32> to vector<512x32xf32>
    %9 = arith.addf %6, %8 : vector<512x32xf32>
    %10 = math.tanh %9 : vector<512x32xf32>
    %c0_10 = arith.constant 0 : index
    %c0_11 = arith.constant 0 : index
    %11 = vector.load %arg6[%c0_10, %c0_11] : memref<32x2xf32, #tpu.memory_space<vmem>>, vector<32x2xf32>
    %cst_12 = arith.constant dense<0.000000e+00> : vector<512x2xf32>
    %12 = tpu.matmul %10, %11, %cst_12 {dimension_numbers = #tpu.dot_dimension_numbers<[1], [0], [0], [1], [0, 0, 1, 1], [], []>} : vector<512x32xf32>, vector<32x2xf32>, vector<512x2xf32> -> vector<512x2xf32>
    %c0_13 = arith.constant 0 : index
    %c0_14 = arith.constant 0 : index
    %13 = vector.load %arg7[%c0_13, %c0_14] : memref<1x2xf32, #tpu.memory_space<vmem>>, vector<1x2xf32>
    %14 = vector.broadcast %13 : vector<1x2xf32> to vector<512x2xf32>
    %15 = arith.addf %12, %14 : vector<512x2xf32>
    %16 = arith.negf %15 : vector<512x2xf32>
    %17 = math.exp %16 : vector<512x2xf32>
    %cst_15 = arith.constant 1.000000e+00 : f32
    %18 = vector.broadcast %cst_15 : f32 to vector<512x2xf32>
    %19 = arith.addf %18, %17 : vector<512x2xf32>
    %20 = arith.divf %18, %19 : vector<512x2xf32>
    %cst_16 = arith.constant 1.000000e+00 : f32
    %21 = vector.broadcast %cst_16 : f32 to vector<512x2xf32>
    %22 = arith.mulf %20, %21 : vector<512x2xf32>
    %cst_17 = arith.constant 0.000000e+00 : f32
    %23 = vector.broadcast %cst_17 : f32 to vector<512x2xf32>
    %24 = arith.addf %22, %23 : vector<512x2xf32>
    %c0_18 = arith.constant 0 : index
    %c0_19 = arith.constant 0 : index
    %25 = vector.load %arg8[%c0_18, %c0_19] : memref<512x2xf32, #tpu.memory_space<vmem>>, vector<512x2xf32>
    tpu.vector_store %arg8[%c0_18, %c0_19], %24 {strides = array<i32>} : memref<512x2xf32, #tpu.memory_space<vmem>>, vector<512x2xf32>,
    return
  }
  func.func @transform_0(%arg0: i32) -> (i32, i32) {
    %c0_i32 = arith.constant 0 : i32
    %c0_i32_0 = arith.constant 0 : i32
    return %arg0, %c0_i32 : i32, i32
  }
  func.func @transform_1(%arg0: i32) -> (i32, i32) {
    %c0_i32 = arith.constant 0 : i32
    %c0_i32_0 = arith.constant 0 : i32
    return %arg0, %c0_i32 : i32, i32
  }
  func.func @transform_2(%arg0: i32) -> (i32, i32) {
    %c0_i32 = arith.constant 0 : i32
    %c0_i32_0 = arith.constant 0 : i32
    %c0_i32_1 = arith.constant 0 : i32
    return %c0_i32, %c0_i32_0 : i32, i32
  }
  func.func @transform_3(%arg0: i32) -> (i32, i32) {
    %c0_i32 = arith.constant 0 : i32
    %c0_i32_0 = arith.constant 0 : i32
    %c0_i32_1 = arith.constant 0 : i32
    return %c0_i32, %c0_i32_0 : i32, i32
  }
  func.func @transform_4(%arg0: i32) -> (i32, i32) {
    %c0_i32 = arith.constant 0 : i32
    %c0_i32_0 = arith.constant 0 : i32
    %c0_i32_1 = arith.constant 0 : i32
    return %c0_i32, %c0_i32_0 : i32, i32
  }
  func.func @transform_5(%arg0: i32) -> (i32, i32) {
    %c0_i32 = arith.constant 0 : i32
    %c0_i32_0 = arith.constant 0 : i32
    %c0_i32_1 = arith.constant 0 : i32
    return %c0_i32, %c0_i32_0 : i32, i32
  }
  func.func @transform_6(%arg0: i32) -> (i32, i32) {
    %c0_i32 = arith.constant 0 : i32
    %c0_i32_0 = arith.constant 0 : i32
    %c0_i32_1 = arith.constant 0 : i32
    return %c0_i32, %c0_i32_0 : i32, i32
  }
  func.func @transform_7(%arg0: i32) -> (i32, i32) {
    %c0_i32 = arith.constant 0 : i32
    %c0_i32_0 = arith.constant 0 : i32
    return %arg0, %c0_i32 : i32, i32
  }
}

</mosaic_0001>

<llo_original>
// kernel: tpu_custom_call.1
$region0: #{tpu_custom_call.1}
  #allocation0 [shape = 'u32[]', space=smem, size = 0x4, offset = 0x4, fixed_abs, tag = 'smem constant byte address 0x4 - core index']
  #allocation1 [shape = 'u32[144,128]{1,0:T(1,128)}', space=vmem, size = 0x12000, scoped, tag = 'internal scratch']
  %s0 = inlined_call_operand.vmem [shape: f32[1024,32], index: 0, kind: input, shape index: {}]
  %s1 = inlined_call_operand.vmem [shape: f32[1024,32], index: 1, kind: input, shape index: {}]
  %s2 = inlined_call_operand.vmem [shape: f32[32,32], index: 2, kind: input, shape index: {}]
  %s3 = inlined_call_operand.vmem [shape: f32[32,32], index: 3, kind: input, shape index: {}]
  %s4 = inlined_call_operand.vmem [shape: f32[1,32], index: 4, kind: input, shape index: {}]
  %s5 = inlined_call_operand.vmem [shape: f32[32,2], index: 5, kind: input, shape index: {}]
  %s6 = inlined_call_operand.vmem [shape: f32[1,2], index: 6, kind: input, shape index: {}]
  %s7 = inlined_call_operand.vmem [shape: f32[1024,2], index: 7, kind: output, shape index: {}]
  %s8 = sld [smem:[#allocation0]]
  $region61: #{tpu_custom_call.1} parent=0
    _
  %s10 = ssub.s32 1, %s8
  %s11 = scalar_select 0, %s10, %s8
  loop: start=0, step=1, limit=4
  $region2: #{tpu_custom_call.1} parent=0 // loop_pre_header
    _
  $region3: #{tpu_custom_call.1} parent=0 // loop_header
    %s13 = sphi 0, %s17
    %p14 = scmp.ge.s32.totalorder %s13, 4
    %s23 = sphi 0, %s25
    %s26 = sphi 0, %s23
    %s27 = sphi 0, %s26
    %s43 = sphi 0, %s27
    %s49 = sphi 0, %s51
    %s52 = sphi 0, %s49
    %s53 = sphi 0, %s52
    %s69 = sphi 0, %s53
    %s73 = sphi 0, %s73
    %s75 = sphi 0, %s73
    %s76 = sphi 0, %s75
    %s90 = sphi 0, %s76
    %s94 = sphi 0, %s94
    %s96 = sphi 0, %s94
    %s97 = sphi 0, %s96
    %s111 = sphi 0, %s97
    %s115 = sphi 0, %s115
    %s117 = sphi 0, %s115
    %s118 = sphi 0, %s117
    %s132 = sphi 0, %s118
    %s136 = sphi 0, %s136
    %s138 = sphi 0, %s136
    %s139 = sphi 0, %s138
    %s153 = sphi 0, %s139
    %s157 = sphi 0, %s157
    %s159 = sphi 0, %s157
    %s160 = sphi 0, %s159
    %s174 = sphi 0, %s160
    %s180 = sphi 0, %s182
    %s183 = sphi 0, %s180
    %s184 = sphi 0, %s183
    %s200 = sphi 0, %s184
  $region4: #{tpu_custom_call.1} parent=0 // loop_header_branch
    %16 = sbr.rel (%p14) target = $region8
  $region5: #{tpu_custom_call.1} parent=0 // loop_body
    %s18 = ssub.s32 %s13, 1
    %s19 = ssub.s32 %s13, 2
    %s20 = sadd.s32 %s13, 1
    %s21 = ssub.s32 %s13, %s20
    %p22 = scmp.eq.s32.totalorder %s21, 0
    %s24 = sadd.s32 %s23, 1
    %s25 = scalar_select %p22, %s23, %s24
    %p28 = pneg %p22
    %p29 = scmp.eq.s32.totalorder %s13, 1
    %p30 = por %p28, %p29
    %p31 = scmp.ne.s32.totalorder %s23, %s26
    %p32 = scmp.eq.s32.totalorder %s13, 0
    %p33 = por %p31, %p32
    %p34 = scmp.ne.s32.totalorder %s23, %s26
    %p35 = scmp.eq.s32.totalorder %s18, 1
    %p36 = por %p34, %p35
    %p37 = scmp.ne.s32.totalorder %s26, %s27
    %p38 = scmp.eq.s32.totalorder %s18, 0
    %p39 = por %p37, %p38
    %p40 = scmp.ne.s32.totalorder %s26, %s27
    %p41 = scmp.eq.s32.totalorder %s19, 1
    %p42 = por %p40, %p41
    %p44 = scmp.ne.s32.totalorder %s27, %s43
    %p45 = scmp.eq.s32.totalorder %s19, 0
    %p46 = por %p44, %p45
    %s47 = ssub.s32 %s13, %s20
    %p48 = scmp.eq.s32.totalorder %s47, 0
    %s50 = sadd.s32 %s49, 1
    %s51 = scalar_select %p48, %s49, %s50
    %p54 = pneg %p48
    %p55 = scmp.eq.s32.totalorder %s13, 1
    %p56 = por %p54, %p55
    %p57 = scmp.ne.s32.totalorder %s49, %s52
    %p58 = scmp.eq.s32.totalorder %s13, 0
    %p59 = por %p57, %p58
    %p60 = scmp.ne.s32.totalorder %s49, %s52
    %p61 = scmp.eq.s32.totalorder %s18, 1
    %p62 = por %p60, %p61
    %p63 = scmp.ne.s32.totalorder %s52, %s53
    %p64 = scmp.eq.s32.totalorder %s18, 0
    %p65 = por %p63, %p64
    %p66 = scmp.ne.s32.totalorder %s52, %s53
    %p67 = scmp.eq.s32.totalorder %s19, 1
    %p68 = por %p66, %p67
    %p70 = scmp.ne.s32.totalorder %s53, %s69
    %p71 = scmp.eq.s32.totalorder %s19, 0
    %p72 = por %p70, %p71
    %s74 = sadd.s32 %s73, 1
    %p77 = scmp.eq.s32.totalorder %s13, 1
    %p78 = scmp.ne.s32.totalorder %s73, %s75
    %p79 = scmp.eq.s32.totalorder %s13, 0
    %p80 = por %p78, %p79
    %p81 = scmp.ne.s32.totalorder %s73, %s75
    %p82 = scmp.eq.s32.totalorder %s18, 1
    %p83 = por %p81, %p82
    %p84 = scmp.ne.s32.totalorder %s75, %s76
    %p85 = scmp.eq.s32.totalorder %s18, 0
    %p86 = por %p84, %p85
    %p87 = scmp.ne.s32.totalorder %s75, %s76
    %p88 = scmp.eq.s32.totalorder %s19, 1
    %p89 = por %p87, %p88
    %p91 = scmp.ne.s32.totalorder %s76, %s90
    %p92 = scmp.eq.s32.totalorder %s19, 0
    %p93 = por %p91, %p92
    %s95 = sadd.s32 %s94, 1
    %p98 = scmp.eq.s32.totalorder %s13, 1
    %p99 = scmp.ne.s32.totalorder %s94, %s96
    %p100 = scmp.eq.s32.totalorder %s13, 0
    %p101 = por %p99, %p100
    %p102 = scmp.ne.s32.totalorder %s94, %s96
    %p103 = scmp.eq.s32.totalorder %s18, 1
    %p104 = por %p102, %p103
    %p105 = scmp.ne.s32.totalorder %s96, %s97
    %p106 = scmp.eq.s32.totalorder %s18, 0
    %p107 = por %p105, %p106
    %p108 = scmp.ne.s32.totalorder %s96, %s97
    %p109 = scmp.eq.s32.totalorder %s19, 1
    %p110 = por %p108, %p109
    %p112 = scmp.ne.s32.totalorder %s97, %s111
    %p113 = scmp.eq.s32.totalorder %s19, 0
    %p114 = por %p112, %p113
    %s116 = sadd.s32 %s115, 1
    %p119 = scmp.eq.s32.totalorder %s13, 1
    %p120 = scmp.ne.s32.totalorder %s115, %s117
    %p121 = scmp.eq.s32.totalorder %s13, 0
    %p122 = por %p120, %p121
    %p123 = scmp.ne.s32.totalorder %s115, %s117
    %p124 = scmp.eq.s32.totalorder %s18, 1
    %p125 = por %p123, %p124
    %p126 = scmp.ne.s32.totalorder %s117, %s118
    %p127 = scmp.eq.s32.totalorder %s18, 0
    %p128 = por %p126, %p127
    %p129 = scmp.ne.s32.totalorder %s117, %s118
    %p130 = scmp.eq.s32.totalorder %s19, 1
    %p131 = por %p129, %p130
    %p133 = scmp.ne.s32.totalorder %s118, %s132
    %p134 = scmp.eq.s32.totalorder %s19, 0
    %p135 = por %p133, %p134
    %s137 = sadd.s32 %s136, 1
    %p140 = scmp.eq.s32.totalorder %s13, 1
    %p141 = scmp.ne.s32.totalorder %s136, %s138
    %p142 = scmp.eq.s32.totalorder %s13, 0
    %p143 = por %p141, %p142
    %p144 = scmp.ne.s32.totalorder %s136, %s138
    %p145 = scmp.eq.s32.totalorder %s18, 1
    %p146 = por %p144, %p145
    %p147 = scmp.ne.s32.totalorder %s138, %s139
    %p148 = scmp.eq.s32.totalorder %s18, 0
    %p149 = por %p147, %p148
    %p150 = scmp.ne.s32.totalorder %s138, %s139
    %p151 = scmp.eq.s32.totalorder %s19, 1
    %p152 = por %p150, %p151
    %p154 = scmp.ne.s32.totalorder %s139, %s153
    %p155 = scmp.eq.s32.totalorder %s19, 0
    %p156 = por %p154, %p155
    %s158 = sadd.s32 %s157, 1
    %p161 = scmp.eq.s32.totalorder %s13, 1
    %p162 = scmp.ne.s32.totalorder %s157, %s159
    %p163 = scmp.eq.s32.totalorder %s13, 0
    %p164 = por %p162, %p163
    %p165 = scmp.ne.s32.totalorder %s157, %s159
    %p166 = scmp.eq.s32.totalorder %s18, 1
    %p167 = por %p165, %p166
    %p168 = scmp.ne.s32.totalorder %s159, %s160
    %p169 = scmp.eq.s32.totalorder %s18, 0
    %p170 = por %p168, %p169
    %p171 = scmp.ne.s32.totalorder %s159, %s160
    %p172 = scmp.eq.s32.totalorder %s19, 1
    %p173 = por %p171, %p172
    %p175 = scmp.ne.s32.totalorder %s160, %s174
    %p176 = scmp.eq.s32.totalorder %s19, 0
    %p177 = por %p175, %p176
    %s178 = ssub.s32 %s13, %s20
    %p179 = scmp.eq.s32.totalorder %s178, 0
    %s181 = sadd.s32 %s180, 1
    %s182 = scalar_select %p179, %s180, %s181
    %p185 = pneg %p179
    %p186 = scmp.eq.s32.totalorder %s13, 1
    %p187 = por %p185, %p186
    %p188 = scmp.ne.s32.totalorder %s180, %s183
    %p189 = scmp.eq.s32.totalorder %s13, 0
    %p190 = por %p188, %p189
    %p191 = scmp.ne.s32.totalorder %s180, %s183
    %p192 = scmp.eq.s32.totalorder %s18, 1
    %p193 = por %p191, %p192
    %p194 = scmp.ne.s32.totalorder %s183, %s184
    %p195 = scmp.eq.s32.totalorder %s18, 0
    %p196 = por %p194, %p195
    %p197 = scmp.ne.s32.totalorder %s183, %s184
    %p198 = scmp.eq.s32.totalorder %s19, 1
    %p199 = por %p197, %p198
    %p201 = scmp.ne.s32.totalorder %s184, %s200
    %p202 = scmp.eq.s32.totalorder %s19, 0
    %p203 = por %p201, %p202
    %p204 = scmp.le.s32.totalorder 1, %s13
    %p205 = scmp.lt.s32.totalorder %s13, 3
    %p206 = pnand %p204, %p205
    %p207 = pneg %p206
    // Predicated region
    $region9: #{tpu_custom_call.1} parent=5 // pred_check
      _
    $region10: #{tpu_custom_call.1} parent=5 // pred_check_branch
      %209 = sbr.rel (%p206) target = $region12
    $region11: #{tpu_custom_call.1} parent=5 // pred_region
      %s210 = ssub.s32 %s13, 1
      // Predicated region
      $region13: #{tpu_custom_call.1} parent=11 // pred_check
        %p211 = pneg %p86
      $region14: #{tpu_custom_call.1} parent=11 // pred_check_branch
        %213 = sbr.rel (%p211) target = $region16
      $region15: #{tpu_custom_call.1} parent=11 // pred_region
        _
      $region16: #{tpu_custom_call.1} parent=11 // pred_fallthru
        _
      // Predicated region
      $region17: #{tpu_custom_call.1} parent=11 // pred_check
        %p214 = pneg %p107
      $region18: #{tpu_custom_call.1} parent=11 // pred_check_branch
        %216 = sbr.rel (%p214) target = $region20
      $region19: #{tpu_custom_call.1} parent=11 // pred_region
        _
      $region20: #{tpu_custom_call.1} parent=11 // pred_fallthru
        _
      // Predicated region
      $region21: #{tpu_custom_call.1} parent=11 // pred_check
        %p217 = pneg %p128
      $region22: #{tpu_custom_call.1} parent=11 // pred_check_branch
        %219 = sbr.rel (%p217) target = $region24
      $region23: #{tpu_custom_call.1} parent=11 // pred_region
        _
      $region24: #{tpu_custom_call.1} parent=11 // pred_fallthru
        _
      // Predicated region
      $region25: #{tpu_custom_call.1} parent=11 // pred_check
        %p220 = pneg %p149
      $region26: #{tpu_custom_call.1} parent=11 // pred_check_branch
        %222 = sbr.rel (%p220) target = $region28
      $region27: #{tpu_custom_call.1} parent=11 // pred_region
        _
      $region28: #{tpu_custom_call.1} parent=11 // pred_fallthru
        _
      // Predicated region
      $region29: #{tpu_custom_call.1} parent=11 // pred_check
        %p223 = pneg %p170
      $region30: #{tpu_custom_call.1} parent=11 // pred_check_branch
        %225 = sbr.rel (%p223) target = $region32
      $region31: #{tpu_custom_call.1} parent=11 // pred_region
        _
      $region32: #{tpu_custom_call.1} parent=11 // pred_fallthru
        _
    $region12: #{tpu_custom_call.1} parent=5 // pred_fallthru
      _
    %p226 = scmp.lt.s32.totalorder %s13, 2
    // Predicated region
    $region33: #{tpu_custom_call.1} parent=5 // pred_check
      %p227 = pneg %p226
    $region34: #{tpu_custom_call.1} parent=5 // pred_check_branch
      %229 = sbr.rel (%p227) target = $region36
    $region35: #{tpu_custom_call.1} parent=5 // pred_region
      // Predicated region
      $region37: #{tpu_custom_call.1} parent=35 // pred_check
        %p230 = pneg %p33
      $region38: #{tpu_custom_call.1} parent=35 // pred_check_branch
        %232 = sbr.rel (%p230) target = $region40
      $region39: #{tpu_custom_call.1} parent=35 // pred_region
        %s233 = smul.u32 64, %s13
        %p234 = scmp.lt.s32.totalorder %s233, 127
        %s235 = scalar_select %p234, %s233, 127
        %s236 = smul.addr %s235, 8
        %s237 = scalar_lea.vmem %s0, %s236
        %s238 = smul.u32 64, %s13
      $region40: #{tpu_custom_call.1} parent=35 // pred_fallthru
        _
      // Predicated region
      $region41: #{tpu_custom_call.1} parent=35 // pred_check
        %p239 = pneg %p59
      $region42: #{tpu_custom_call.1} parent=35 // pred_check_branch
        %241 = sbr.rel (%p239) target = $region44
      $region43: #{tpu_custom_call.1} parent=35 // pred_region
        %s242 = smul.u32 64, %s13
        %p243 = scmp.lt.s32.totalorder %s242, 127
        %s244 = scalar_select %p243, %s242, 127
        %s245 = smul.addr %s244, 8
        %s246 = scalar_lea.vmem %s1, %s245
        %s247 = smul.u32 64, %s13
      $region44: #{tpu_custom_call.1} parent=35 // pred_fallthru
        _
    $region36: #{tpu_custom_call.1} parent=5 // pred_fallthru
      _
    %p248 = scmp.le.s32.totalorder 1, %s13
    %p249 = scmp.lt.s32.totalorder %s13, 3
    %p250 = pnand %p248, %p249
    %p251 = pneg %p250
    // Predicated region
    $region45: #{tpu_custom_call.1} parent=5 // pred_check
      _
    $region46: #{tpu_custom_call.1} parent=5 // pred_check_branch
      %253 = sbr.rel (%p250) target = $region48
    $region47: #{tpu_custom_call.1} parent=5 // pred_region
      %s254 = ssub.s32 %s13, 1
      %s255 = smul.u32 64, %s18
      %p256 = scmp.lt.s32.totalorder %s255, 127
      %s257 = scalar_select %p256, %s255, 127
      %s258 = smul.addr %s257, 8
      %s259 = scalar_lea.vmem %s0, %s258
      %p260 = pneg %p39
      %p261 = pneg %p36
      %s262 = smul.u32 64, %s18
      %p263 = scmp.lt.s32.totalorder %s262, 127
      %s264 = scalar_select %p263, %s262, 127
      %s265 = smul.addr %s264, 8
      %s266 = scalar_lea.vmem %s1, %s265
      %p267 = pneg %p65
      %p268 = pneg %p62
      %p269 = pneg %p86
      %p270 = pneg %p83
      %p271 = pneg %p107
      %p272 = pneg %p104
      %p273 = pneg %p128
      %p274 = pneg %p125
      %p275 = pneg %p149
      %p276 = pneg %p146
      %p277 = pneg %p170
      %p278 = pneg %p167
      %p279 = pneg %p196
      %p280 = pneg %p193
      %s281 = smul.u32 64, %s18
      %p282 = scmp.lt.s32.totalorder %s281, 127
      %s283 = scalar_select %p282, %s281, 127
      %s284 = smul.addr %s283, 8
      %s285 = scalar_lea.vmem %s7, %s284
      %s286 = smul.u32 64, %s18
      %p287 = scmp.lt.s32.totalorder %s286, 127
      %s288 = scalar_select %p287, %s286, 127
      %s289 = smul.addr %s288, 8
      %s290 = scalar_lea.vmem %s0, %s289
      %s291 = smul.u32 64, %s18
      %s292 = smul.u32 64, %s18
      %p293 = scmp.lt.s32.totalorder %s292, 127
      %s294 = scalar_select %p293, %s292, 127
      %s295 = smul.addr %s294, 8
      %s296 = scalar_lea.vmem %s1, %s295
      %s297 = smul.u32 64, %s18
      %s298 = smul.u32 64, %s18
      %p299 = scmp.lt.s32.totalorder %s298, 127
      %s300 = scalar_select %p299, %s298, 127
      %s301 = smul.addr %s300, 8
      %s302 = scalar_lea.vmem %s7, %s301
      %s303 = smul.u32 64, %s18
      %v304 = vld [vmem:[%s290] sm:$0xff]
      %v305 = vld [vmem:[%s290 + $0x8] sm:$0xff]
      %v306 = vld [vmem:[%s290 + $0x10] sm:$0xff]
      %v307 = vld [vmem:[%s290 + $0x18] sm:$0xff]
      %v308 = vld [vmem:[%s290 + $0x20] sm:$0xff]
      %v309 = vld [vmem:[%s290 + $0x28] sm:$0xff]
      %v310 = vld [vmem:[%s290 + $0x30] sm:$0xff]
      %v311 = vld [vmem:[%s290 + $0x38] sm:$0xff]
      %v312 = vld [vmem:[%s290 + $0x40] sm:$0xff]
      %v313 = vld [vmem:[%s290 + $0x48] sm:$0xff]
      %v314 = vld [vmem:[%s290 + $0x50] sm:$0xff]
      %v315 = vld [vmem:[%s290 + $0x58] sm:$0xff]
      %v316 = vld [vmem:[%s290 + $0x60] sm:$0xff]
      %v317 = vld [vmem:[%s290 + $0x68] sm:$0xff]
      %v318 = vld [vmem:[%s290 + $0x70] sm:$0xff]
      %v319 = vld [vmem:[%s290 + $0x78] sm:$0xff]
      %v320 = vld [vmem:[%s290 + $0x80] sm:$0xff]
      %v321 = vld [vmem:[%s290 + $0x88] sm:$0xff]
      %v322 = vld [vmem:[%s290 + $0x90] sm:$0xff]
      %v323 = vld [vmem:[%s290 + $0x98] sm:$0xff]
      %v324 = vld [vmem:[%s290 + $0xa0] sm:$0xff]
      %v325 = vld [vmem:[%s290 + $0xa8] sm:$0xff]
      %v326 = vld [vmem:[%s290 + $0xb0] sm:$0xff]
      %v327 = vld [vmem:[%s290 + $0xb8] sm:$0xff]
      %v328 = vld [vmem:[%s290 + $0xc0] sm:$0xff]
      %v329 = vld [vmem:[%s290 + $0xc8] sm:$0xff]
      %v330 = vld [vmem:[%s290 + $0xd0] sm:$0xff]
      %v331 = vld [vmem:[%s290 + $0xd8] sm:$0xff]
      %v332 = vld [vmem:[%s290 + $0xe0] sm:$0xff]
      %v333 = vld [vmem:[%s290 + $0xe8] sm:$0xff]
      %v334 = vld [vmem:[%s290 + $0xf0] sm:$0xff]
      %v335 = vld [vmem:[%s290 + $0xf8] sm:$0xff]
      %v336 = vld [vmem:[%s290 + $0x100] sm:$0xff]
      %v337 = vld [vmem:[%s290 + $0x108] sm:$0xff]
      %v338 = vld [vmem:[%s290 + $0x110] sm:$0xff]
      %v339 = vld [vmem:[%s290 + $0x118] sm:$0xff]
      %v340 = vld [vmem:[%s290 + $0x120] sm:$0xff]
      %v341 = vld [vmem:[%s290 + $0x128] sm:$0xff]
      %v342 = vld [vmem:[%s290 + $0x130] sm:$0xff]
      %v343 = vld [vmem:[%s290 + $0x138] sm:$0xff]
      %v344 = vld [vmem:[%s290 + $0x140] sm:$0xff]
      %v345 = vld [vmem:[%s290 + $0x148] sm:$0xff]
      %v346 = vld [vmem:[%s290 + $0x150] sm:$0xff]
      %v347 = vld [vmem:[%s290 + $0x158] sm:$0xff]
      %v348 = vld [vmem:[%s290 + $0x160] sm:$0xff]
      %v349 = vld [vmem:[%s290 + $0x168] sm:$0xff]
      %v350 = vld [vmem:[%s290 + $0x170] sm:$0xff]
      %v351 = vld [vmem:[%s290 + $0x178] sm:$0xff]
      %v352 = vld [vmem:[%s290 + $0x180] sm:$0xff]
      %v353 = vld [vmem:[%s290 + $0x188] sm:$0xff]
      %v354 = vld [vmem:[%s290 + $0x190] sm:$0xff]
      %v355 = vld [vmem:[%s290 + $0x198] sm:$0xff]
      %v356 = vld [vmem:[%s290 + $0x1a0] sm:$0xff]
      %v357 = vld [vmem:[%s290 + $0x1a8] sm:$0xff]
      %v358 = vld [vmem:[%s290 + $0x1b0] sm:$0xff]
      %v359 = vld [vmem:[%s290 + $0x1b8] sm:$0xff]
      %v360 = vld [vmem:[%s290 + $0x1c0] sm:$0xff]
      %v361 = vld [vmem:[%s290 + $0x1c8] sm:$0xff]
      %v362 = vld [vmem:[%s290 + $0x1d0] sm:$0xff]
      %v363 = vld [vmem:[%s290 + $0x1d8] sm:$0xff]
      %v364 = vld [vmem:[%s290 + $0x1e0] sm:$0xff]
      %v365 = vld [vmem:[%s290 + $0x1e8] sm:$0xff]
      %v366 = vld [vmem:[%s290 + $0x1f0] sm:$0xff]
      %v367 = vld [vmem:[%s290 + $0x1f8] sm:$0xff]
      %v368 = vld [vmem:[%s2] sm:$0xff]
      %v369 = vld [vmem:[%s2 + $0x8] sm:$0xff]
      %v370 = vld [vmem:[%s2 + $0x10] sm:$0xff]
      %v371 = vld [vmem:[%s2 + $0x18] sm:$0xff]
      %v372 = vld [vmem:[%s296] sm:$0xff]
      %v373 = vld [vmem:[%s296 + $0x8] sm:$0xff]
      %v374 = vld [vmem:[%s296 + $0x10] sm:$0xff]
      %v375 = vld [vmem:[%s296 + $0x18] sm:$0xff]
      %v376 = vld [vmem:[%s296 + $0x20] sm:$0xff]
      %v377 = vld [vmem:[%s296 + $0x28] sm:$0xff]
      %v378 = vld [vmem:[%s296 + $0x30] sm:$0xff]
      %v379 = vld [vmem:[%s296 + $0x38] sm:$0xff]
      %v380 = vld [vmem:[%s296 + $0x40] sm:$0xff]
      %v381 = vld [vmem:[%s296 + $0x48] sm:$0xff]
      %v382 = vld [vmem:[%s296 + $0x50] sm:$0xff]
      %v383 = vld [vmem:[%s296 + $0x58] sm:$0xff]
      %v384 = vld [vmem:[%s296 + $0x60] sm:$0xff]
      %v385 = vld [vmem:[%s296 + $0x68] sm:$0xff]
      %v386 = vld [vmem:[%s296 + $0x70] sm:$0xff]
      %v387 = vld [vmem:[%s296 + $0x78] sm:$0xff]
      %v388 = vld [vmem:[%s296 + $0x80] sm:$0xff]
      %v389 = vld [vmem:[%s296 + $0x88] sm:$0xff]
      %v390 = vld [vmem:[%s296 + $0x90] sm:$0xff]
      %v391 = vld [vmem:[%s296 + $0x98] sm:$0xff]
      %v392 = vld [vmem:[%s296 + $0xa0] sm:$0xff]
      %v393 = vld [vmem:[%s296 + $0xa8] sm:$0xff]
      %v394 = vld [vmem:[%s296 + $0xb0] sm:$0xff]
      %v395 = vld [vmem:[%s296 + $0xb8] sm:$0xff]
      %v396 = vld [vmem:[%s296 + $0xc0] sm:$0xff]
      %v397 = vld [vmem:[%s296 + $0xc8] sm:$0xff]
      %v398 = vld [vmem:[%s296 + $0xd0] sm:$0xff]
      %v399 = vld [vmem:[%s296 + $0xd8] sm:$0xff]
      %v400 = vld [vmem:[%s296 + $0xe0] sm:$0xff]
      %v401 = vld [vmem:[%s296 + $0xe8] sm:$0xff]
      %v402 = vld [vmem:[%s296 + $0xf0] sm:$0xff]
      %v403 = vld [vmem:[%s296 + $0xf8] sm:$0xff]
      %v404 = vld [vmem:[%s296 + $0x100] sm:$0xff]
      %v405 = vld [vmem:[%s296 + $0x108] sm:$0xff]
      %v406 = vld [vmem:[%s296 + $0x110] sm:$0xff]
      %v407 = vld [vmem:[%s296 + $0x118] sm:$0xff]
      %v408 = vld [vmem:[%s296 + $0x120] sm:$0xff]
      %v409 = vld [vmem:[%s296 + $0x128] sm:$0xff]
      %v410 = vld [vmem:[%s296 + $0x130] sm:$0xff]
      %v411 = vld [vmem:[%s296 + $0x138] sm:$0xff]
      %v412 = vld [vmem:[%s296 + $0x140] sm:$0xff]
      %v413 = vld [vmem:[%s296 + $0x148] sm:$0xff]
      %v414 = vld [vmem:[%s296 + $0x150] sm:$0xff]
      %v415 = vld [vmem:[%s296 + $0x158] sm:$0xff]
      %v416 = vld [vmem:[%s296 + $0x160] sm:$0xff]
      %v417 = vld [vmem:[%s296 + $0x168] sm:$0xff]
      %v418 = vld [vmem:[%s296 + $0x170] sm:$0xff]
      %v419 = vld [vmem:[%s296 + $0x178] sm:$0xff]
      %v420 = vld [vmem:[%s296 + $0x180] sm:$0xff]
      %v421 = vld [vmem:[%s296 + $0x188] sm:$0xff]
      %v422 = vld [vmem:[%s296 + $0x190] sm:$0xff]
      %v423 = vld [vmem:[%s296 + $0x198] sm:$0xff]
      %v424 = vld [vmem:[%s296 + $0x1a0] sm:$0xff]
      %v425 = vld [vmem:[%s296 + $0x1a8] sm:$0xff]
      %v426 = vld [vmem:[%s296 + $0x1b0] sm:$0xff]
      %v427 = vld [vmem:[%s296 + $0x1b8] sm:$0xff]
      %v428 = vld [vmem:[%s296 + $0x1c0] sm:$0xff]
      %v429 = vld [vmem:[%s296 + $0x1c8] sm:$0xff]
      %v430 = vld [vmem:[%s296 + $0x1d0] sm:$0xff]
      %v431 = vld [vmem:[%s296 + $0x1d8] sm:$0xff]
      %v432 = vld [vmem:[%s296 + $0x1e0] sm:$0xff]
      %v433 = vld [vmem:[%s296 + $0x1e8] sm:$0xff]
      %v434 = vld [vmem:[%s296 + $0x1f0] sm:$0xff]
      %v435 = vld [vmem:[%s296 + $0x1f8] sm:$0xff]
      %v436 = vld [vmem:[%s3] sm:$0xff]
      %v437 = vld [vmem:[%s3 + $0x8] sm:$0xff]
      %v438 = vld [vmem:[%s3 + $0x10] sm:$0xff]
      %v439 = vld [vmem:[%s3 + $0x18] sm:$0xff]
      %vm440 = vcmask 261120
      %v442 = vsel %vm440, %v372, 0
      %v445 = vsel %vm440, %v373, 0
      %v448 = vsel %vm440, %v374, 0
      %v451 = vsel %vm440, %v375, 0
      %v454 = vsel %vm440, %v376, 0
      %v457 = vsel %vm440, %v377, 0
      %v460 = vsel %vm440, %v378, 0
      %v463 = vsel %vm440, %v379, 0
      %v466 = vsel %vm440, %v380, 0
      %v469 = vsel %vm440, %v381, 0
      %v472 = vsel %vm440, %v382, 0
      %v475 = vsel %vm440, %v383, 0
      %v478 = vsel %vm440, %v384, 0
      %v481 = vsel %vm440, %v385, 0
      %v484 = vsel %vm440, %v386, 0
      %v487 = vsel %vm440, %v387, 0
      %v490 = vsel %vm440, %v388, 0
      %v493 = vsel %vm440, %v389, 0
      %v496 = vsel %vm440, %v390, 0
      %v499 = vsel %vm440, %v391, 0
      %v502 = vsel %vm440, %v392, 0
      %v505 = vsel %vm440, %v393, 0
      %v508 = vsel %vm440, %v394, 0
      %v511 = vsel %vm440, %v395, 0
      %v514 = vsel %vm440, %v396, 0
      %v517 = vsel %vm440, %v397, 0
      %v520 = vsel %vm440, %v398, 0
      %v523 = vsel %vm440, %v399, 0
      %v526 = vsel %vm440, %v400, 0
      %v529 = vsel %vm440, %v401, 0
      %v532 = vsel %vm440, %v402, 0
      %v535 = vsel %vm440, %v403, 0
      %v538 = vsel %vm440, %v404, 0
      %v541 = vsel %vm440, %v405, 0
      %v544 = vsel %vm440, %v406, 0
      %v547 = vsel %vm440, %v407, 0
      %v550 = vsel %vm440, %v408, 0
      %v553 = vsel %vm440, %v409, 0
      %v556 = vsel %vm440, %v410, 0
      %v559 = vsel %vm440, %v411, 0
      %v562 = vsel %vm440, %v412, 0
      %v565 = vsel %vm440, %v413, 0
      %v568 = vsel %vm440, %v414, 0
      %v571 = vsel %vm440, %v415, 0
      %v574 = vsel %vm440, %v416, 0
      %v577 = vsel %vm440, %v417, 0
      %v580 = vsel %vm440, %v418, 0
      %v583 = vsel %vm440, %v419, 0
      %v586 = vsel %vm440, %v420, 0
      %v589 = vsel %vm440, %v421, 0
      %v592 = vsel %vm440, %v422, 0
      %v595 = vsel %vm440, %v423, 0
      %v598 = vsel %vm440, %v424, 0
      %v601 = vsel %vm440, %v425, 0
      %v604 = vsel %vm440, %v426, 0
      %v607 = vsel %vm440, %v427, 0
      %v610 = vsel %vm440, %v428, 0
      %v613 = vsel %vm440, %v429, 0
      %v616 = vsel %vm440, %v430, 0
      %v619 = vsel %vm440, %v431, 0
      %v622 = vsel %vm440, %v432, 0
      %v625 = vsel %vm440, %v433, 0
      %v628 = vsel %vm440, %v434, 0
      %v631 = vsel %vm440, %v435, 0
      %633 = vmatprep.subr.mxu0 0.0
      %634 = vmatpush1.msra.mxu0 %v436
      %635 = vmatprep.subr.mxu0 0.0
      %636 = vmatpush1.msra.mxu0 %v437
      %637 = vmatprep.subr.mxu0 0.0
      %638 = vmatpush1.msra.mxu0 %v438
      %639 = vmatprep.subr.mxu0 0.0
      %640 = vmatpush1.msra.mxu0 %v439
      %641 = vmatprep.subr.mxu0 0.0
      %642 = vmatpush1.msra.mxu0 0.0
      %643 = vmatprep.subr.mxu0 0.0
      %644 = vmatpush1.msra.mxu0 0.0
      %645 = vmatprep.subr.mxu0 0.0
      %646 = vmatpush1.msra.mxu0 0.0
      %647 = vmatprep.subr.mxu0 0.0
      %648 = vmatpush1.msra.mxu0 0.0
      %649 = vmatprep.subr.mxu0 0.0
      %650 = vmatpush1.msra.mxu0 0.0
      %651 = vmatprep.subr.mxu0 0.0
      %652 = vmatpush1.msra.mxu0 0.0
      %653 = vmatprep.subr.mxu0 0.0
      %654 = vmatpush1.msra.mxu0 0.0
      %655 = vmatprep.subr.mxu0 0.0
      %656 = vmatpush1.msra.mxu0 0.0
      %657 = vmatprep.subr.mxu0 0.0
      %658 = vmatpush1.msra.mxu0 0.0
      %659 = vmatprep.subr.mxu0 0.0
      %660 = vmatpush1.msra.mxu0 0.0
      %661 = vmatprep.subr.mxu0 0.0
      %662 = vmatpush1.msra.mxu0 0.0
      %663 = vmatprep.subr.mxu0 0.0
      %664 = vmatpush1.msra.mxu0 0.0
      %665 = vmatprep.subr.mxu0 0.0
      %666 = vmatpush1.msra.mxu0 0.0
      %667 = vmatprep.subr.mxu0 0.0
      %668 = vmatpush1.msra.mxu0 0.0
      %669 = vmatprep.subr.mxu0 0.0
      %670 = vmatpush1.msra.mxu0 0.0
      %671 = vmatprep.subr.mxu0 0.0
      %672 = vmatpush1.msra.mxu0 0.0
      %673 = vmatprep.subr.mxu0 0.0
      %674 = vmatpush1.msra.mxu0 0.0
      %675 = vmatprep.subr.mxu0 0.0
      %676 = vmatpush1.msra.mxu0 0.0
      %677 = vmatprep.subr.mxu0 0.0
      %678 = vmatpush1.msra.mxu0 0.0
      %679 = vmatprep.subr.mxu0 0.0
      %680 = vmatpush1.msra.mxu0 0.0
      %681 = vmatprep.subr.mxu0 0.0
      %682 = vmatpush1.msra.mxu0 0.0
      %683 = vmatprep.subr.mxu0 0.0
      %684 = vmatpush1.msra.mxu0 0.0
      %685 = vmatprep.subr.mxu0 0.0
      %686 = vmatpush1.msra.mxu0 0.0
      %687 = vmatprep.subr.mxu0 0.0
      %688 = vmatpush1.msra.mxu0 0.0
      %689 = vmatprep.subr.mxu0 0.0
      %690 = vmatpush1.msra.mxu0 0.0
      %691 = vmatprep.subr.mxu0 0.0
      %692 = vmatpush1.msra.mxu0 0.0
      %693 = vmatprep.subr.mxu0 0.0
      %694 = vmatpush1.msra.mxu0 0.0
      %695 = vmatprep.subr.mxu0 0.0
      %696 = vmatpush1.msra.mxu0 0.0
      %697 = vmatprep.mubr.f32.mxu0 0.0
      %698 = vmatmul.mubr.f32.gmra.mrb[0].mxu0 %v442
      %v699 = vpop.f32.mrb[0].mxu0
      %v700 = vadd.f32 0.0, %v699
      %v701 = vpop.f32.mrb[0].mxu0
      %702 = vmatprep.mubr.f32.mxu0 0.0
      %703 = vmatmul.mubr.f32.gmra.mrb[0].mxu0 %v445
      %v704 = vpop.f32.mrb[0].mxu0
      %v705 = vadd.f32 0.0, %v704
      %v706 = vpop.f32.mrb[0].mxu0
      %707 = vmatprep.mubr.f32.mxu0 0.0
      %708 = vmatmul.mubr.f32.gmra.mrb[0].mxu0 %v448
      %v709 = vpop.f32.mrb[0].mxu0
      %v710 = vadd.f32 0.0, %v709
      %v711 = vpop.f32.mrb[0].mxu0
      %712 = vmatprep.mubr.f32.mxu0 0.0
      %713 = vmatmul.mubr.f32.gmra.mrb[0].mxu0 %v451
      %v714 = vpop.f32.mrb[0].mxu0
      %v715 = vadd.f32 0.0, %v714
      %v716 = vpop.f32.mrb[0].mxu0
      %717 = vmatprep.mubr.f32.mxu0 0.0
      %718 = vmatmul.mubr.f32.gmra.mrb[0].mxu0 %v454
      %v719 = vpop.f32.mrb[0].mxu0
      %v720 = vadd.f32 0.0, %v719
      %v721 = vpop.f32.mrb[0].mxu0
      %722 = vmatprep.mubr.f32.mxu0 0.0
      %723 = vmatmul.mubr.f32.gmra.mrb[0].mxu0 %v457
      %v724 = vpop.f32.mrb[0].mxu0
      %v725 = vadd.f32 0.0, %v724
      %v726 = vpop.f32.mrb[0].mxu0
      %727 = vmatprep.mubr.f32.mxu0 0.0
      %728 = vmatmul.mubr.f32.gmra.mrb[0].mxu0 %v460
      %v729 = vpop.f32.mrb[0].mxu0
      %v730 = vadd.f32 0.0, %v729
      %v731 = vpop.f32.mrb[0].mxu0
      %732 = vmatprep.mubr.f32.mxu0 0.0
      %733 = vmatmul.mubr.f32.gmra.mrb[0].mxu0 %v463
      %v734 = vpop.f32.mrb[0].mxu0
      %v735 = vadd.f32 0.0, %v734
      %v736 = vpop.f32.mrb[0].mxu0
      %737 = vmatprep.mubr.f32.mxu0 0.0
      %738 = vmatmul.mubr.f32.gmra.mrb[0].mxu0 %v466
      %v739 = vpop.f32.mrb[0].mxu0
      %v740 = vadd.f32 0.0, %v739
      %v741 = vpop.f32.mrb[0].mxu0
      %742 = vmatprep.mubr.f32.mxu0 0.0
      %743 = vmatmul.mubr.f32.gmra.mrb[0].mxu0 %v469
      %v744 = vpop.f32.mrb[0].mxu0
      %v745 = vadd.f32 0.0, %v744
      %v746 = vpop.f32.mrb[0].mxu0
      %747 = vmatprep.mubr.f32.mxu0 0.0
      %748 = vmatmul.mubr.f32.gmra.mrb[0].mxu0 %v472
      %v749 = vpop.f32.mrb[0].mxu0
      %v750 = vadd.f32 0.0, %v749
      %v751 = vpop.f32.mrb[0].mxu0
      %752 = vmatprep.mubr.f32.mxu0 0.0
      %753 = vmatmul.mubr.f32.gmra.mrb[0].mxu0 %v475
      %v754 = vpop.f32.mrb[0].mxu0
      %v755 = vadd.f32 0.0, %v754
      %v756 = vpop.f32.mrb[0].mxu0
      %757 = vmatprep.mubr.f32.mxu0 0.0
      %758 = vmatmul.mubr.f32.gmra.mrb[0].mxu0 %v478
      %v759 = vpop.f32.mrb[0].mxu0
      %v760 = vadd.f32 0.0, %v759
      %v761 = vpop.f32.mrb[0].mxu0
      %762 = vmatprep.mubr.f32.mxu0 0.0
      %763 = vmatmul.mubr.f32.gmra.mrb[0].mxu0 %v481
      %v764 = vpop.f32.mrb[0].mxu0
      %v765 = vadd.f32 0.0, %v764
      %v766 = vpop.f32.mrb[0].mxu0
      %767 = vmatprep.mubr.f32.mxu0 0.0
      %768 = vmatmul.mubr.f32.gmra.mrb[0].mxu0 %v484
      %v769 = vpop.f32.mrb[0].mxu0
      %v770 = vadd.f32 0.0, %v769
      %v771 = vpop.f32.mrb[0].mxu0
      %772 = vmatprep.mubr.f32.mxu0 0.0
      %773 = vmatmul.mubr.f32.gmra.mrb[0].mxu0 %v487
      %v774 = vpop.f32.mrb[0].mxu0
      %v775 = vadd.f32 0.0, %v774
      %v776 = vpop.f32.mrb[0].mxu0
      %777 = vmatprep.mubr.f32.mxu0 0.0
      %778 = vmatmul.mubr.f32.gmra.mrb[0].mxu0 %v490
      %v779 = vpop.f32.mrb[0].mxu0
      %v780 = vadd.f32 0.0, %v779
      %v781 = vpop.f32.mrb[0].mxu0
      %782 = vmatprep.mubr.f32.mxu0 0.0
      %783 = vmatmul.mubr.f32.gmra.mrb[0].mxu0 %v493
      %v784 = vpop.f32.mrb[0].mxu0
      %v785 = vadd.f32 0.0, %v784
      %v786 = vpop.f32.mrb[0].mxu0
      %787 = vmatprep.mubr.f32.mxu0 0.0
      %788 = vmatmul.mubr.f32.gmra.mrb[0].mxu0 %v496
      %v789 = vpop.f32.mrb[0].mxu0
      %v790 = vadd.f32 0.0, %v789
      %v791 = vpop.f32.mrb[0].mxu0
      %792 = vmatprep.mubr.f32.mxu0 0.0
      %793 = vmatmul.mubr.f32.gmra.mrb[0].mxu0 %v499
      %v794 = vpop.f32.mrb[0].mxu0
      %v795 = vadd.f32 0.0, %v794
      %v796 = vpop.f32.mrb[0].mxu0
      %797 = vmatprep.mubr.f32.mxu0 0.0
      %798 = vmatmul.mubr.f32.gmra.mrb[0].mxu0 %v502
      %v799 = vpop.f32.mrb[0].mxu0
      %v800 = vadd.f32 0.0, %v799
      %v801 = vpop.f32.mrb[0].mxu0
      %802 = vmatprep.mubr.f32.mxu0 0.0
      %803 = vmatmul.mubr.f32.gmra.mrb[0].mxu0 %v505
      %v804 = vpop.f32.mrb[0].mxu0
      %v805 = vadd.f32 0.0, %v804
      %v806 = vpop.f32.mrb[0].mxu0
      %807 = vmatprep.mubr.f32.mxu0 0.0
      %808 = vmatmul.mubr.f32.gmra.mrb[0].mxu0 %v508
      %v809 = vpop.f32.mrb[0].mxu0
      %v810 = vadd.f32 0.0, %v809
      %v811 = vpop.f32.mrb[0].mxu0
      %812 = vmatprep.mubr.f32.mxu0 0.0
      %813 = vmatmul.mubr.f32.gmra.mrb[0].mxu0 %v511
      %v814 = vpop.f32.mrb[0].mxu0
      %v815 = vadd.f32 0.0, %v814
      %v816 = vpop.f32.mrb[0].mxu0
      %817 = vmatprep.mubr.f32.mxu0 0.0
      %818 = vmatmul.mubr.f32.gmra.mrb[0].mxu0 %v514
      %v819 = vpop.f32.mrb[0].mxu0
      %v820 = vadd.f32 0.0, %v819
      %v821 = vpop.f32.mrb[0].mxu0
      %822 = vmatprep.mubr.f32.mxu0 0.0
      %823 = vmatmul.mubr.f32.gmra.mrb[0].mxu0 %v517
      %v824 = vpop.f32.mrb[0].mxu0
      %v825 = vadd.f32 0.0, %v824
      %v826 = vpop.f32.mrb[0].mxu0
      %827 = vmatprep.mubr.f32.mxu0 0.0
      %828 = vmatmul.mubr.f32.gmra.mrb[0].mxu0 %v520
      %v829 = vpop.f32.mrb[0].mxu0
      %v830 = vadd.f32 0.0, %v829
      %v831 = vpop.f32.mrb[0].mxu0
      %832 = vmatprep.mubr.f32.mxu0 0.0
      %833 = vmatmul.mubr.f32.gmra.mrb[0].mxu0 %v523
      %v834 = vpop.f32.mrb[0].mxu0
      %v835 = vadd.f32 0.0, %v834
      %v836 = vpop.f32.mrb[0].mxu0
      %837 = vmatprep.mubr.f32.mxu0 0.0
      %838 = vmatmul.mubr.f32.gmra.mrb[0].mxu0 %v526
      %v839 = vpop.f32.mrb[0].mxu0
      %v840 = vadd.f32 0.0, %v839
      %v841 = vpop.f32.mrb[0].mxu0
      %842 = vmatprep.mubr.f32.mxu0 0.0
      %843 = vmatmul.mubr.f32.gmra.mrb[0].mxu0 %v529
      %v844 = vpop.f32.mrb[0].mxu0
      %v845 = vadd.f32 0.0, %v844
      %v846 = vpop.f32.mrb[0].mxu0
      %847 = vmatprep.mubr.f32.mxu0 0.0
      %848 = vmatmul.mubr.f32.gmra.mrb[0].mxu0 %v532
      %v849 = vpop.f32.mrb[0].mxu0
      %v850 = vadd.f32 0.0, %v849
      %v851 = vpop.f32.mrb[0].mxu0
      %852 = vmatprep.mubr.f32.mxu0 0.0
      %853 = vmatmul.mubr.f32.gmra.mrb[0].mxu0 %v535
      %v854 = vpop.f32.mrb[0].mxu0
      %v855 = vadd.f32 0.0, %v854
      %v856 = vpop.f32.mrb[0].mxu0
      %857 = vmatprep.mubr.f32.mxu0 0.0
      %858 = vmatmul.mubr.f32.gmra.mrb[0].mxu0 %v538
      %v859 = vpop.f32.mrb[0].mxu0
      %v860 = vadd.f32 0.0, %v859
      %v861 = vpop.f32.mrb[0].mxu0
      %862 = vmatprep.mubr.f32.mxu0 0.0
      %863 = vmatmul.mubr.f32.gmra.mrb[0].mxu0 %v541
      %v864 = vpop.f32.mrb[0].mxu0
      %v865 = vadd.f32 0.0, %v864
      %v866 = vpop.f32.mrb[0].mxu0
      %867 = vmatprep.mubr.f32.mxu0 0.0
      %868 = vmatmul.mubr.f32.gmra.mrb[0].mxu0 %v544
      %v869 = vpop.f32.mrb[0].mxu0
      %v870 = vadd.f32 0.0, %v869
      %v871 = vpop.f32.mrb[0].mxu0
      %872 = vmatprep.mubr.f32.mxu0 0.0
      %873 = vmatmul.mubr.f32.gmra.mrb[0].mxu0 %v547
      %v874 = vpop.f32.mrb[0].mxu0
      %v875 = vadd.f32 0.0, %v874
      %v876 = vpop.f32.mrb[0].mxu0
      %877 = vmatprep.mubr.f32.mxu0 0.0
      %878 = vmatmul.mubr.f32.gmra.mrb[0].mxu0 %v550
      %v879 = vpop.f32.mrb[0].mxu0
      %v880 = vadd.f32 0.0, %v879
      %v881 = vpop.f32.mrb[0].mxu0
      %882 = vmatprep.mubr.f32.mxu0 0.0
      %883 = vmatmul.mubr.f32.gmra.mrb[0].mxu0 %v553
      %v884 = vpop.f32.mrb[0].mxu0
      %v885 = vadd.f32 0.0, %v884
      %v886 = vpop.f32.mrb[0].mxu0
      %887 = vmatprep.mubr.f32.mxu0 0.0
      %888 = vmatmul.mubr.f32.gmra.mrb[0].mxu0 %v556
      %v889 = vpop.f32.mrb[0].mxu0
      %v890 = vadd.f32 0.0, %v889
      %v891 = vpop.f32.mrb[0].mxu0
      %892 = vmatprep.mubr.f32.mxu0 0.0
      %893 = vmatmul.mubr.f32.gmra.mrb[0].mxu0 %v559
      %v894 = vpop.f32.mrb[0].mxu0
      %v895 = vadd.f32 0.0, %v894
      %v896 = vpop.f32.mrb[0].mxu0
      %897 = vmatprep.mubr.f32.mxu0 0.0
      %898 = vmatmul.mubr.f32.gmra.mrb[0].mxu0 %v562
      %v899 = vpop.f32.mrb[0].mxu0
      %v900 = vadd.f32 0.0, %v899
      %v901 = vpop.f32.mrb[0].mxu0
      %902 = vmatprep.mubr.f32.mxu0 0.0
      %903 = vmatmul.mubr.f32.gmra.mrb[0].mxu0 %v565
      %v904 = vpop.f32.mrb[0].mxu0
      %v905 = vadd.f32 0.0, %v904
      %v906 = vpop.f32.mrb[0].mxu0
      %907 = vmatprep.mubr.f32.mxu0 0.0
      %908 = vmatmul.mubr.f32.gmra.mrb[0].mxu0 %v568
      %v909 = vpop.f32.mrb[0].mxu0
      %v910 = vadd.f32 0.0, %v909
      %v911 = vpop.f32.mrb[0].mxu0
      %912 = vmatprep.mubr.f32.mxu0 0.0
      %913 = vmatmul.mubr.f32.gmra.mrb[0].mxu0 %v571
      %v914 = vpop.f32.mrb[0].mxu0
      %v915 = vadd.f32 0.0, %v914
      %v916 = vpop.f32.mrb[0].mxu0
      %917 = vmatprep.mubr.f32.mxu0 0.0
      %918 = vmatmul.mubr.f32.gmra.mrb[0].mxu0 %v574
      %v919 = vpop.f32.mrb[0].mxu0
      %v920 = vadd.f32 0.0, %v919
      %v921 = vpop.f32.mrb[0].mxu0
      %922 = vmatprep.mubr.f32.mxu0 0.0
      %923 = vmatmul.mubr.f32.gmra.mrb[0].mxu0 %v577
      %v924 = vpop.f32.mrb[0].mxu0
      %v925 = vadd.f32 0.0, %v924
      %v926 = vpop.f32.mrb[0].mxu0
      %927 = vmatprep.mubr.f32.mxu0 0.0
      %928 = vmatmul.mubr.f32.gmra.mrb[0].mxu0 %v580
      %v929 = vpop.f32.mrb[0].mxu0
      %v930 = vadd.f32 0.0, %v929
      %v931 = vpop.f32.mrb[0].mxu0
      %932 = vmatprep.mubr.f32.mxu0 0.0
      %933 = vmatmul.mubr.f32.gmra.mrb[0].mxu0 %v583
      %v934 = vpop.f32.mrb[0].mxu0
      %v935 = vadd.f32 0.0, %v934
      %v936 = vpop.f32.mrb[0].mxu0
      %937 = vmatprep.mubr.f32.mxu0 0.0
      %938 = vmatmul.mubr.f32.gmra.mrb[0].mxu0 %v586
      %v939 = vpop.f32.mrb[0].mxu0
      %v940 = vadd.f32 0.0, %v939
      %v941 = vpop.f32.mrb[0].mxu0
      %942 = vmatprep.mubr.f32.mxu0 0.0
      %943 = vmatmul.mubr.f32.gmra.mrb[0].mxu0 %v589
      %v944 = vpop.f32.mrb[0].mxu0
      %v945 = vadd.f32 0.0, %v944
      %v946 = vpop.f32.mrb[0].mxu0
      %947 = vmatprep.mubr.f32.mxu0 0.0
      %948 = vmatmul.mubr.f32.gmra.mrb[0].mxu0 %v592
      %v949 = vpop.f32.mrb[0].mxu0
      %v950 = vadd.f32 0.0, %v949
      %v951 = vpop.f32.mrb[0].mxu0
      %952 = vmatprep.mubr.f32.mxu0 0.0
      %953 = vmatmul.mubr.f32.gmra.mrb[0].mxu0 %v595
      %v954 = vpop.f32.mrb[0].mxu0
      %v955 = vadd.f32 0.0, %v954
      %v956 = vpop.f32.mrb[0].mxu0
      %957 = vmatprep.mubr.f32.mxu0 0.0
      %958 = vmatmul.mubr.f32.gmra.mrb[0].mxu0 %v598
      %v959 = vpop.f32.mrb[0].mxu0
      %v960 = vadd.f32 0.0, %v959
      %v961 = vpop.f32.mrb[0].mxu0
      %962 = vmatprep.mubr.f32.mxu0 0.0
      %963 = vmatmul.mubr.f32.gmra.mrb[0].mxu0 %v601
      %v964 = vpop.f32.mrb[0].mxu0
      %v965 = vadd.f32 0.0, %v964
      %v966 = vpop.f32.mrb[0].mxu0
      %967 = vmatprep.mubr.f32.mxu0 0.0
      %968 = vmatmul.mubr.f32.gmra.mrb[0].mxu0 %v604
      %v969 = vpop.f32.mrb[0].mxu0
      %v970 = vadd.f32 0.0, %v969
      %v971 = vpop.f32.mrb[0].mxu0
      %972 = vmatprep.mubr.f32.mxu0 0.0
      %973 = vmatmul.mubr.f32.gmra.mrb[0].mxu0 %v607
      %v974 = vpop.f32.mrb[0].mxu0
      %v975 = vadd.f32 0.0, %v974
      %v976 = vpop.f32.mrb[0].mxu0
      %977 = vmatprep.mubr.f32.mxu0 0.0
      %978 = vmatmul.mubr.f32.gmra.mrb[0].mxu0 %v610
      %v979 = vpop.f32.mrb[0].mxu0
      %v980 = vadd.f32 0.0, %v979
      %v981 = vpop.f32.mrb[0].mxu0
      %982 = vmatprep.mubr.f32.mxu0 0.0
      %983 = vmatmul.mubr.f32.gmra.mrb[0].mxu0 %v613
      %v984 = vpop.f32.mrb[0].mxu0
      %v985 = vadd.f32 0.0, %v984
      %v986 = vpop.f32.mrb[0].mxu0
      %987 = vmatprep.mubr.f32.mxu0 0.0
      %988 = vmatmul.mubr.f32.gmra.mrb[0].mxu0 %v616
      %v989 = vpop.f32.mrb[0].mxu0
      %v990 = vadd.f32 0.0, %v989
      %v991 = vpop.f32.mrb[0].mxu0
      %992 = vmatprep.mubr.f32.mxu0 0.0
      %993 = vmatmul.mubr.f32.gmra.mrb[0].mxu0 %v619
      %v994 = vpop.f32.mrb[0].mxu0
      %v995 = vadd.f32 0.0, %v994
      %v996 = vpop.f32.mrb[0].mxu0
      %997 = vmatprep.mubr.f32.mxu0 0.0
      %998 = vmatmul.mubr.f32.gmra.mrb[0].mxu0 %v622
      %v999 = vpop.f32.mrb[0].mxu0
      %v1000 = vadd.f32 0.0, %v999
      %v1001 = vpop.f32.mrb[0].mxu0
      %1002 = vmatprep.mubr.f32.mxu0 0.0
      %1003 = vmatmul.mubr.f32.gmra.mrb[0].mxu0 %v625
      %v1004 = vpop.f32.mrb[0].mxu0
      %v1005 = vadd.f32 0.0, %v1004
      %v1006 = vpop.f32.mrb[0].mxu0
      %1007 = vmatprep.mubr.f32.mxu0 0.0
      %1008 = vmatmul.mubr.f32.gmra.mrb[0].mxu0 %v628
      %v1009 = vpop.f32.mrb[0].mxu0
      %v1010 = vadd.f32 0.0, %v1009
      %v1011 = vpop.f32.mrb[0].mxu0
      %1012 = vmatprep.mubr.f32.mxu0 0.0
      %1013 = vmatmul.mubr.f32.gmra.mrb[0].mxu0 %v631
      %v1014 = vpop.f32.mrb[0].mxu0
      %v1015 = vadd.f32 0.0, %v1014
      %v1016 = vpop.f32.mrb[0].mxu0
      %1017 = vdwg.mxu0
      %v1019 = vsel %vm440, %v304, 0
      %v1022 = vsel %vm440, %v305, 0
      %v1025 = vsel %vm440, %v306, 0
      %v1028 = vsel %vm440, %v307, 0
      %v1031 = vsel %vm440, %v308, 0
      %v1034 = vsel %vm440, %v309, 0
      %v1037 = vsel %vm440, %v310, 0
      %v1040 = vsel %vm440, %v311, 0
      %v1043 = vsel %vm440, %v312, 0
      %v1046 = vsel %vm440, %v313, 0
      %v1049 = vsel %vm440, %v314, 0
      %v1052 = vsel %vm440, %v315, 0
      %v1055 = vsel %vm440, %v316, 0
      %v1058 = vsel %vm440, %v317, 0
      %v1061 = vsel %vm440, %v318, 0
      %v1064 = vsel %vm440, %v319, 0
      %v1067 = vsel %vm440, %v320, 0
      %v1070 = vsel %vm440, %v321, 0
      %v1073 = vsel %vm440, %v322, 0
      %v1076 = vsel %vm440, %v323, 0
      %v1079 = vsel %vm440, %v324, 0
      %v1082 = vsel %vm440, %v325, 0
      %v1085 = vsel %vm440, %v326, 0
      %v1088 = vsel %vm440, %v327, 0
      %v1091 = vsel %vm440, %v328, 0
      %v1094 = vsel %vm440, %v329, 0
      %v1097 = vsel %vm440, %v330, 0
      %v1100 = vsel %vm440, %v331, 0
      %v1103 = vsel %vm440, %v332, 0
      %v1106 = vsel %vm440, %v333, 0
      %v1109 = vsel %vm440, %v334, 0
      %v1112 = vsel %vm440, %v335, 0
      %v1115 = vsel %vm440, %v336, 0
      %v1118 = vsel %vm440, %v337, 0
      %v1121 = vsel %vm440, %v338, 0
      %v1124 = vsel %vm440, %v339, 0
      %v1127 = vsel %vm440, %v340, 0
      %v1130 = vsel %vm440, %v341, 0
      %v1133 = vsel %vm440, %v342, 0
      %v1136 = vsel %vm440, %v343, 0
      %v1139 = vsel %vm440, %v344, 0
      %v1142 = vsel %vm440, %v345, 0
      %v1145 = vsel %vm440, %v346, 0
      %v1148 = vsel %vm440, %v347, 0
      %v1151 = vsel %vm440, %v348, 0
      %v1154 = vsel %vm440, %v349, 0
      %v1157 = vsel %vm440, %v350, 0
      %v1160 = vsel %vm440, %v351, 0
      %v1163 = vsel %vm440, %v352, 0
      %v1166 = vsel %vm440, %v353, 0
      %v1169 = vsel %vm440, %v354, 0
      %v1172 = vsel %vm440, %v355, 0
      %v1175 = vsel %vm440, %v356, 0
      %v1178 = vsel %vm440, %v357, 0
      %v1181 = vsel %vm440, %v358, 0
      %v1184 = vsel %vm440, %v359, 0
      %v1187 = vsel %vm440, %v360, 0
      %v1190 = vsel %vm440, %v361, 0
      %v1193 = vsel %vm440, %v362, 0
      %v1196 = vsel %vm440, %v363, 0
      %v1199 = vsel %vm440, %v364, 0
      %v1202 = vsel %vm440, %v365, 0
      %v1205 = vsel %vm440, %v366, 0
      %v1208 = vsel %vm440, %v367, 0
      %1210 = vmatprep.subr.mxu0 0.0
      %1211 = vmatpush1.msra.mxu0 %v368
      %1212 = vmatprep.subr.mxu0 0.0
      %1213 = vmatpush1.msra.mxu0 %v369
      %1214 = vmatprep.subr.mxu0 0.0
      %1215 = vmatpush1.msra.mxu0 %v370
      %1216 = vmatprep.subr.mxu0 0.0
      %1217 = vmatpush1.msra.mxu0 %v371
      %1218 = vmatprep.subr.mxu0 0.0
      %1219 = vmatpush1.msra.mxu0 0.0
      %1220 = vmatprep.subr.mxu0 0.0
      %1221 = vmatpush1.msra.mxu0 0.0
      %1222 = vmatprep.subr.mxu0 0.0
      %1223 = vmatpush1.msra.mxu0 0.0
      %1224 = vmatprep.subr.mxu0 0.0
      %1225 = vmatpush1.msra.mxu0 0.0
      %1226 = vmatprep.subr.mxu0 0.0
      %1227 = vmatpush1.msra.mxu0 0.0
      %1228 = vmatprep.subr.mxu0 0.0
      %1229 = vmatpush1.msra.mxu0 0.0
      %1230 = vmatprep.subr.mxu0 0.0
      %1231 = vmatpush1.msra.mxu0 0.0
      %1232 = vmatprep.subr.mxu0 0.0
      %1233 = vmatpush1.msra.mxu0 0.0
      %1234 = vmatprep.subr.mxu0 0.0
      %1235 = vmatpush1.msra.mxu0 0.0
      %1236 = vmatprep.subr.mxu0 0.0
      %1237 = vmatpush1.msra.mxu0 0.0
      %1238 = vmatprep.subr.mxu0 0.0
      %1239 = vmatpush1.msra.mxu0 0.0
      %1240 = vmatprep.subr.mxu0 0.0
      %1241 = vmatpush1.msra.mxu0 0.0
      %1242 = vmatprep.subr.mxu0 0.0
      %1243 = vmatpush1.msra.mxu0 0.0
      %1244 = vmatprep.subr.mxu0 0.0
      %1245 = vmatpush1.msra.mxu0 0.0
      %1246 = vmatprep.subr.mxu0 0.0
      %1247 = vmatpush1.msra.mxu0 0.0
      %1248 = vmatprep.subr.mxu0 0.0
      %1249 = vmatpush1.msra.mxu0 0.0
      %1250 = vmatprep.subr.mxu0 0.0
      %1251 = vmatpush1.msra.mxu0 0.0
      %1252 = vmatprep.subr.mxu0 0.0
      %1253 = vmatpush1.msra.mxu0 0.0
      %1254 = vmatprep.subr.mxu0 0.0
      %1255 = vmatpush1.msra.mxu0 0.0
      %1256 = vmatprep.subr.mxu0 0.0
      %1257 = vmatpush1.msra.mxu0 0.0
      %1258 = vmatprep.subr.mxu0 0.0
      %1259 = vmatpush1.msra.mxu0 0.0
      %1260 = vmatprep.subr.mxu0 0.0
      %1261 = vmatpush1.msra.mxu0 0.0
      %1262 = vmatprep.subr.mxu0 0.0
      %1263 = vmatpush1.msra.mxu0 0.0
      %1264 = vmatprep.subr.mxu0 0.0
      %1265 = vmatpush1.msra.mxu0 0.0
      %1266 = vmatprep.subr.mxu0 0.0
      %1267 = vmatpush1.msra.mxu0 0.0
      %1268 = vmatprep.subr.mxu0 0.0
      %1269 = vmatpush1.msra.mxu0 0.0
      %1270 = vmatprep.subr.mxu0 0.0
      %1271 = vmatpush1.msra.mxu0 0.0
      %1272 = vmatprep.subr.mxu0 0.0
      %1273 = vmatpush1.msra.mxu0 0.0
      %1274 = vmatprep.mubr.f32.mxu0 0.0
      %1275 = vmatmul.mubr.f32.gmra.mrb[0].mxu0 %v1019
      %v1276 = vpop.f32.mrb[0].mxu0
      %v1277 = vadd.f32 %v700, %v1276
      %v1278 = vpop.f32.mrb[0].mxu0
      %1279 = vmatprep.mubr.f32.mxu0 0.0
      %1280 = vmatmul.mubr.f32.gmra.mrb[0].mxu0 %v1022
      %v1281 = vpop.f32.mrb[0].mxu0
      %v1282 = vadd.f32 %v705, %v1281
      %v1283 = vpop.f32.mrb[0].mxu0
      %1284 = vmatprep.mubr.f32.mxu0 0.0
      %1285 = vmatmul.mubr.f32.gmra.mrb[0].mxu0 %v1025
      %v1286 = vpop.f32.mrb[0].mxu0
      %v1287 = vadd.f32 %v710, %v1286
      %v1288 = vpop.f32.mrb[0].mxu0
      %1289 = vmatprep.mubr.f32.mxu0 0.0
      %1290 = vmatmul.mubr.f32.gmra.mrb[0].mxu0 %v1028
      %v1291 = vpop.f32.mrb[0].mxu0
      %v1292 = vadd.f32 %v715, %v1291
      %v1293 = vpop.f32.mrb[0].mxu0
      %1294 = vmatprep.mubr.f32.mxu0 0.0
      %1295 = vmatmul.mubr.f32.gmra.mrb[0].mxu0 %v1031
      %v1296 = vpop.f32.mrb[0].mxu0
      %v1297 = vadd.f32 %v720, %v1296
      %v1298 = vpop.f32.mrb[0].mxu0
      %1299 = vmatprep.mubr.f32.mxu0 0.0
      %1300 = vmatmul.mubr.f32.gmra.mrb[0].mxu0 %v1034
      %v1301 = vpop.f32.mrb[0].mxu0
      %v1302 = vadd.f32 %v725, %v1301
      %v1303 = vpop.f32.mrb[0].mxu0
      %1304 = vmatprep.mubr.f32.mxu0 0.0
      %1305 = vmatmul.mubr.f32.gmra.mrb[0].mxu0 %v1037
      %v1306 = vpop.f32.mrb[0].mxu0
      %v1307 = vadd.f32 %v730, %v1306
      %v1308 = vpop.f32.mrb[0].mxu0
      %1309 = vmatprep.mubr.f32.mxu0 0.0
      %1310 = vmatmul.mubr.f32.gmra.mrb[0].mxu0 %v1040
      %v1311 = vpop.f32.mrb[0].mxu0
      %v1312 = vadd.f32 %v735, %v1311
      %v1313 = vpop.f32.mrb[0].mxu0
      %1314 = vmatprep.mubr.f32.mxu0 0.0
      %1315 = vmatmul.mubr.f32.gmra.mrb[0].mxu0 %v1043
      %v1316 = vpop.f32.mrb[0].mxu0
      %v1317 = vadd.f32 %v740, %v1316
      %v1318 = vpop.f32.mrb[0].mxu0
      %1319 = vmatprep.mubr.f32.mxu0 0.0
      %1320 = vmatmul.mubr.f32.gmra.mrb[0].mxu0 %v1046
      %v1321 = vpop.f32.mrb[0].mxu0
      %v1322 = vadd.f32 %v745, %v1321
      %v1323 = vpop.f32.mrb[0].mxu0
      %1324 = vmatprep.mubr.f32.mxu0 0.0
      %1325 = vmatmul.mubr.f32.gmra.mrb[0].mxu0 %v1049
      %v1326 = vpop.f32.mrb[0].mxu0
      %v1327 = vadd.f32 %v750, %v1326
      %v1328 = vpop.f32.mrb[0].mxu0
      %1329 = vmatprep.mubr.f32.mxu0 0.0
      %1330 = vmatmul.mubr.f32.gmra.mrb[0].mxu0 %v1052
      %v1331 = vpop.f32.mrb[0].mxu0
      %v1332 = vadd.f32 %v755, %v1331
      %v1333 = vpop.f32.mrb[0].mxu0
      %1334 = vmatprep.mubr.f32.mxu0 0.0
      %1335 = vmatmul.mubr.f32.gmra.mrb[0].mxu0 %v1055
      %v1336 = vpop.f32.mrb[0].mxu0
      %v1337 = vadd.f32 %v760, %v1336
      %v1338 = vpop.f32.mrb[0].mxu0
      %1339 = vmatprep.mubr.f32.mxu0 0.0
      %1340 = vmatmul.mubr.f32.gmra.mrb[0].mxu0 %v1058
      %v1341 = vpop.f32.mrb[0].mxu0
      %v1342 = vadd.f32 %v765, %v1341
      %v1343 = vpop.f32.mrb[0].mxu0
      %1344 = vmatprep.mubr.f32.mxu0 0.0
      %1345 = vmatmul.mubr.f32.gmra.mrb[0].mxu0 %v1061
      %v1346 = vpop.f32.mrb[0].mxu0
      %v1347 = vadd.f32 %v770, %v1346
      %v1348 = vpop.f32.mrb[0].mxu0
      %1349 = vmatprep.mubr.f32.mxu0 0.0
      %1350 = vmatmul.mubr.f32.gmra.mrb[0].mxu0 %v1064
      %v1351 = vpop.f32.mrb[0].mxu0
      %v1352 = vadd.f32 %v775, %v1351
      %v1353 = vpop.f32.mrb[0].mxu0
      %1354 = vmatprep.mubr.f32.mxu0 0.0
      %1355 = vmatmul.mubr.f32.gmra.mrb[0].mxu0 %v1067
      %v1356 = vpop.f32.mrb[0].mxu0
      %v1357 = vadd.f32 %v780, %v1356
      %v1358 = vpop.f32.mrb[0].mxu0
      %1359 = vmatprep.mubr.f32.mxu0 0.0
      %1360 = vmatmul.mubr.f32.gmra.mrb[0].mxu0 %v1070
      %v1361 = vpop.f32.mrb[0].mxu0
      %v1362 = vadd.f32 %v785, %v1361
      %v1363 = vpop.f32.mrb[0].mxu0
      %1364 = vmatprep.mubr.f32.mxu0 0.0
      %1365 = vmatmul.mubr.f32.gmra.mrb[0].mxu0 %v1073
      %v1366 = vpop.f32.mrb[0].mxu0
      %v1367 = vadd.f32 %v790, %v1366
      %v1368 = vpop.f32.mrb[0].mxu0
      %1369 = vmatprep.mubr.f32.mxu0 0.0
      %1370 = vmatmul.mubr.f32.gmra.mrb[0].mxu0 %v1076
      %v1371 = vpop.f32.mrb[0].mxu0
      %v1372 = vadd.f32 %v795, %v1371
      %v1373 = vpop.f32.mrb[0].mxu0
      %1374 = vmatprep.mubr.f32.mxu0 0.0
      %1375 = vmatmul.mubr.f32.gmra.mrb[0].mxu0 %v1079
      %v1376 = vpop.f32.mrb[0].mxu0
      %v1377 = vadd.f32 %v800, %v1376
      %v1378 = vpop.f32.mrb[0].mxu0
      %1379 = vmatprep.mubr.f32.mxu0 0.0
      %1380 = vmatmul.mubr.f32.gmra.mrb[0].mxu0 %v1082
      %v1381 = vpop.f32.mrb[0].mxu0
      %v1382 = vadd.f32 %v805, %v1381
      %v1383 = vpop.f32.mrb[0].mxu0
      %1384 = vmatprep.mubr.f32.mxu0 0.0
      %1385 = vmatmul.mubr.f32.gmra.mrb[0].mxu0 %v1085
      %v1386 = vpop.f32.mrb[0].mxu0
      %v1387 = vadd.f32 %v810, %v1386
      %v1388 = vpop.f32.mrb[0].mxu0
      %1389 = vmatprep.mubr.f32.mxu0 0.0
      %1390 = vmatmul.mubr.f32.gmra.mrb[0].mxu0 %v1088
      %v1391 = vpop.f32.mrb[0].mxu0
      %v1392 = vadd.f32 %v815, %v1391
      %v1393 = vpop.f32.mrb[0].mxu0
      %1394 = vmatprep.mubr.f32.mxu0 0.0
      %1395 = vmatmul.mubr.f32.gmra.mrb[0].mxu0 %v1091
      %v1396 = vpop.f32.mrb[0].mxu0
      %v1397 = vadd.f32 %v820, %v1396
      %v1398 = vpop.f32.mrb[0].mxu0
      %1399 = vmatprep.mubr.f32.mxu0 0.0
      %1400 = vmatmul.mubr.f32.gmra.mrb[0].mxu0 %v1094
      %v1401 = vpop.f32.mrb[0].mxu0
      %v1402 = vadd.f32 %v825, %v1401
      %v1403 = vpop.f32.mrb[0].mxu0
      %1404 = vmatprep.mubr.f32.mxu0 0.0
      %1405 = vmatmul.mubr.f32.gmra.mrb[0].mxu0 %v1097
      %v1406 = vpop.f32.mrb[0].mxu0
      %v1407 = vadd.f32 %v830, %v1406
      %v1408 = vpop.f32.mrb[0].mxu0
      %1409 = vmatprep.mubr.f32.mxu0 0.0
      %1410 = vmatmul.mubr.f32.gmra.mrb[0].mxu0 %v1100
      %v1411 = vpop.f32.mrb[0].mxu0
      %v1412 = vadd.f32 %v835, %v1411
      %v1413 = vpop.f32.mrb[0].mxu0
      %1414 = vmatprep.mubr.f32.mxu0 0.0
      %1415 = vmatmul.mubr.f32.gmra.mrb[0].mxu0 %v1103
      %v1416 = vpop.f32.mrb[0].mxu0
      %v1417 = vadd.f32 %v840, %v1416
      %v1418 = vpop.f32.mrb[0].mxu0
      %1419 = vmatprep.mubr.f32.mxu0 0.0
      %1420 = vmatmul.mubr.f32.gmra.mrb[0].mxu0 %v1106
      %v1421 = vpop.f32.mrb[0].mxu0
      %v1422 = vadd.f32 %v845, %v1421
      %v1423 = vpop.f32.mrb[0].mxu0
      %1424 = vmatprep.mubr.f32.mxu0 0.0
      %1425 = vmatmul.mubr.f32.gmra.mrb[0].mxu0 %v1109
      %v1426 = vpop.f32.mrb[0].mxu0
      %v1427 = vadd.f32 %v850, %v1426
      %v1428 = vpop.f32.mrb[0].mxu0
      %1429 = vmatprep.mubr.f32.mxu0 0.0
      %1430 = vmatmul.mubr.f32.gmra.mrb[0].mxu0 %v1112
      %v1431 = vpop.f32.mrb[0].mxu0
      %v1432 = vadd.f32 %v855, %v1431
      %v1433 = vpop.f32.mrb[0].mxu0
      %1434 = vmatprep.mubr.f32.mxu0 0.0
      %1435 = vmatmul.mubr.f32.gmra.mrb[0].mxu0 %v1115
      %v1436 = vpop.f32.mrb[0].mxu0
      %v1437 = vadd.f32 %v860, %v1436
      %v1438 = vpop.f32.mrb[0].mxu0
      %1439 = vmatprep.mubr.f32.mxu0 0.0
      %1440 = vmatmul.mubr.f32.gmra.mrb[0].mxu0 %v1118
      %v1441 = vpop.f32.mrb[0].mxu0
      %v1442 = vadd.f32 %v865, %v1441
      %v1443 = vpop.f32.mrb[0].mxu0
      %1444 = vmatprep.mubr.f32.mxu0 0.0
      %1445 = vmatmul.mubr.f32.gmra.mrb[0].mxu0 %v1121
      %v1446 = vpop.f32.mrb[0].mxu0
      %v1447 = vadd.f32 %v870, %v1446
      %v1448 = vpop.f32.mrb[0].mxu0
      %1449 = vmatprep.mubr.f32.mxu0 0.0
      %1450 = vmatmul.mubr.f32.gmra.mrb[0].mxu0 %v1124
      %v1451 = vpop.f32.mrb[0].mxu0
      %v1452 = vadd.f32 %v875, %v1451
      %v1453 = vpop.f32.mrb[0].mxu0
      %1454 = vmatprep.mubr.f32.mxu0 0.0
      %1455 = vmatmul.mubr.f32.gmra.mrb[0].mxu0 %v1127
      %v1456 = vpop.f32.mrb[0].mxu0
      %v1457 = vadd.f32 %v880, %v1456
      %v1458 = vpop.f32.mrb[0].mxu0
      %1459 = vmatprep.mubr.f32.mxu0 0.0
      %1460 = vmatmul.mubr.f32.gmra.mrb[0].mxu0 %v1130
      %v1461 = vpop.f32.mrb[0].mxu0
      %v1462 = vadd.f32 %v885, %v1461
      %v1463 = vpop.f32.mrb[0].mxu0
      %1464 = vmatprep.mubr.f32.mxu0 0.0
      %1465 = vmatmul.mubr.f32.gmra.mrb[0].mxu0 %v1133
      %v1466 = vpop.f32.mrb[0].mxu0
      %v1467 = vadd.f32 %v890, %v1466
      %v1468 = vpop.f32.mrb[0].mxu0
      %1469 = vmatprep.mubr.f32.mxu0 0.0
      %1470 = vmatmul.mubr.f32.gmra.mrb[0].mxu0 %v1136
      %v1471 = vpop.f32.mrb[0].mxu0
      %v1472 = vadd.f32 %v895, %v1471
      %v1473 = vpop.f32.mrb[0].mxu0
      %1474 = vmatprep.mubr.f32.mxu0 0.0
      %1475 = vmatmul.mubr.f32.gmra.mrb[0].mxu0 %v1139
      %v1476 = vpop.f32.mrb[0].mxu0
      %v1477 = vadd.f32 %v900, %v1476
      %v1478 = vpop.f32.mrb[0].mxu0
      %1479 = vmatprep.mubr.f32.mxu0 0.0
      %1480 = vmatmul.mubr.f32.gmra.mrb[0].mxu0 %v1142
      %v1481 = vpop.f32.mrb[0].mxu0
      %v1482 = vadd.f32 %v905, %v1481
      %v1483 = vpop.f32.mrb[0].mxu0
      %1484 = vmatprep.mubr.f32.mxu0 0.0
      %1485 = vmatmul.mubr.f32.gmra.mrb[0].mxu0 %v1145
      %v1486 = vpop.f32.mrb[0].mxu0
      %v1487 = vadd.f32 %v910, %v1486
      %v1488 = vpop.f32.mrb[0].mxu0
      %1489 = vmatprep.mubr.f32.mxu0 0.0
      %1490 = vmatmul.mubr.f32.gmra.mrb[0].mxu0 %v1148
      %v1491 = vpop.f32.mrb[0].mxu0
      %v1492 = vadd.f32 %v915, %v1491
      %v1493 = vpop.f32.mrb[0].mxu0
      %1494 = vmatprep.mubr.f32.mxu0 0.0
      %1495 = vmatmul.mubr.f32.gmra.mrb[0].mxu0 %v1151
      %v1496 = vpop.f32.mrb[0].mxu0
      %v1497 = vadd.f32 %v920, %v1496
      %v1498 = vpop.f32.mrb[0].mxu0
      %1499 = vmatprep.mubr.f32.mxu0 0.0
      %1500 = vmatmul.mubr.f32.gmra.mrb[0].mxu0 %v1154
      %v1501 = vpop.f32.mrb[0].mxu0
      %v1502 = vadd.f32 %v925, %v1501
      %v1503 = vpop.f32.mrb[0].mxu0
      %1504 = vmatprep.mubr.f32.mxu0 0.0
      %1505 = vmatmul.mubr.f32.gmra.mrb[0].mxu0 %v1157
      %v1506 = vpop.f32.mrb[0].mxu0
      %v1507 = vadd.f32 %v930, %v1506
      %v1508 = vpop.f32.mrb[0].mxu0
      %1509 = vmatprep.mubr.f32.mxu0 0.0
      %1510 = vmatmul.mubr.f32.gmra.mrb[0].mxu0 %v1160
      %v1511 = vpop.f32.mrb[0].mxu0
      %v1512 = vadd.f32 %v935, %v1511
      %v1513 = vpop.f32.mrb[0].mxu0
      %1514 = vmatprep.mubr.f32.mxu0 0.0
      %1515 = vmatmul.mubr.f32.gmra.mrb[0].mxu0 %v1163
      %v1516 = vpop.f32.mrb[0].mxu0
      %v1517 = vadd.f32 %v940, %v1516
      %v1518 = vpop.f32.mrb[0].mxu0
      %1519 = vmatprep.mubr.f32.mxu0 0.0
      %1520 = vmatmul.mubr.f32.gmra.mrb[0].mxu0 %v1166
      %v1521 = vpop.f32.mrb[0].mxu0
      %v1522 = vadd.f32 %v945, %v1521
      %v1523 = vpop.f32.mrb[0].mxu0
      %1524 = vmatprep.mubr.f32.mxu0 0.0
      %1525 = vmatmul.mubr.f32.gmra.mrb[0].mxu0 %v1169
      %v1526 = vpop.f32.mrb[0].mxu0
      %v1527 = vadd.f32 %v950, %v1526
      %v1528 = vpop.f32.mrb[0].mxu0
      %1529 = vmatprep.mubr.f32.mxu0 0.0
      %1530 = vmatmul.mubr.f32.gmra.mrb[0].mxu0 %v1172
      %v1531 = vpop.f32.mrb[0].mxu0
      %v1532 = vadd.f32 %v955, %v1531
      %v1533 = vpop.f32.mrb[0].mxu0
      %1534 = vmatprep.mubr.f32.mxu0 0.0
      %1535 = vmatmul.mubr.f32.gmra.mrb[0].mxu0 %v1175
      %v1536 = vpop.f32.mrb[0].mxu0
      %v1537 = vadd.f32 %v960, %v1536
      %v1538 = vpop.f32.mrb[0].mxu0
      %1539 = vmatprep.mubr.f32.mxu0 0.0
      %1540 = vmatmul.mubr.f32.gmra.mrb[0].mxu0 %v1178
      %v1541 = vpop.f32.mrb[0].mxu0
      %v1542 = vadd.f32 %v965, %v1541
      %v1543 = vpop.f32.mrb[0].mxu0
      %1544 = vmatprep.mubr.f32.mxu0 0.0
      %1545 = vmatmul.mubr.f32.gmra.mrb[0].mxu0 %v1181
      %v1546 = vpop.f32.mrb[0].mxu0
      %v1547 = vadd.f32 %v970, %v1546
      %v1548 = vpop.f32.mrb[0].mxu0
      %1549 = vmatprep.mubr.f32.mxu0 0.0
      %1550 = vmatmul.mubr.f32.gmra.mrb[0].mxu0 %v1184
      %v1551 = vpop.f32.mrb[0].mxu0
      %v1552 = vadd.f32 %v975, %v1551
      %v1553 = vpop.f32.mrb[0].mxu0
      %1554 = vmatprep.mubr.f32.mxu0 0.0
      %1555 = vmatmul.mubr.f32.gmra.mrb[0].mxu0 %v1187
      %v1556 = vpop.f32.mrb[0].mxu0
      %v1557 = vadd.f32 %v980, %v1556
      %v1558 = vpop.f32.mrb[0].mxu0
      %1559 = vmatprep.mubr.f32.mxu0 0.0
      %1560 = vmatmul.mubr.f32.gmra.mrb[0].mxu0 %v1190
      %v1561 = vpop.f32.mrb[0].mxu0
      %v1562 = vadd.f32 %v985, %v1561
      %v1563 = vpop.f32.mrb[0].mxu0
      %1564 = vmatprep.mubr.f32.mxu0 0.0
      %1565 = vmatmul.mubr.f32.gmra.mrb[0].mxu0 %v1193
      %v1566 = vpop.f32.mrb[0].mxu0
      %v1567 = vadd.f32 %v990, %v1566
      %v1568 = vpop.f32.mrb[0].mxu0
      %1569 = vmatprep.mubr.f32.mxu0 0.0
      %1570 = vmatmul.mubr.f32.gmra.mrb[0].mxu0 %v1196
      %v1571 = vpop.f32.mrb[0].mxu0
      %v1572 = vadd.f32 %v995, %v1571
      %v1573 = vpop.f32.mrb[0].mxu0
      %1574 = vmatprep.mubr.f32.mxu0 0.0
      %1575 = vmatmul.mubr.f32.gmra.mrb[0].mxu0 %v1199
      %v1576 = vpop.f32.mrb[0].mxu0
      %v1577 = vadd.f32 %v1000, %v1576
      %v1578 = vpop.f32.mrb[0].mxu0
      %1579 = vmatprep.mubr.f32.mxu0 0.0
      %1580 = vmatmul.mubr.f32.gmra.mrb[0].mxu0 %v1202
      %v1581 = vpop.f32.mrb[0].mxu0
      %v1582 = vadd.f32 %v1005, %v1581
      %v1583 = vpop.f32.mrb[0].mxu0
      %1584 = vmatprep.mubr.f32.mxu0 0.0
      %1585 = vmatmul.mubr.f32.gmra.mrb[0].mxu0 %v1205
      %v1586 = vpop.f32.mrb[0].mxu0
      %v1587 = vadd.f32 %v1010, %v1586
      %v1588 = vpop.f32.mrb[0].mxu0
      %1589 = vmatprep.mubr.f32.mxu0 0.0
      %1590 = vmatmul.mubr.f32.gmra.mrb[0].mxu0 %v1208
      %v1591 = vpop.f32.mrb[0].mxu0
      %v1592 = vadd.f32 %v1015, %v1591
      %v1593 = vpop.f32.mrb[0].mxu0
      %1594 = vdwg.mxu0
      %v1595 = vld [vmem:[%s4] sm:$0x1]
      %v1597 = vlaneseq
      %v1598 = vshrl.u32 %v1597, 7
      %v1599 = vsub.s32 0, %v1598
      %v1600 = vrot.slane %v1595, %v1599
      %v1602 = vadd.f32 %v1277, %v1600
      %v1603 = vadd.f32 %v1282, %v1600
      %v1604 = vadd.f32 %v1287, %v1600
      %v1605 = vadd.f32 %v1292, %v1600
      %v1606 = vadd.f32 %v1297, %v1600
      %v1607 = vadd.f32 %v1302, %v1600
      %v1608 = vadd.f32 %v1307, %v1600
      %v1609 = vadd.f32 %v1312, %v1600
      %v1610 = vadd.f32 %v1317, %v1600
      %v1611 = vadd.f32 %v1322, %v1600
      %v1612 = vadd.f32 %v1327, %v1600
      %v1613 = vadd.f32 %v1332, %v1600
      %v1614 = vadd.f32 %v1337, %v1600
      %v1615 = vadd.f32 %v1342, %v1600
      %v1616 = vadd.f32 %v1347, %v1600
      %v1617 = vadd.f32 %v1352, %v1600
      %v1618 = vadd.f32 %v1357, %v1600
      %v1619 = vadd.f32 %v1362, %v1600
      %v1620 = vadd.f32 %v1367, %v1600
      %v1621 = vadd.f32 %v1372, %v1600
      %v1622 = vadd.f32 %v1377, %v1600
      %v1623 = vadd.f32 %v1382, %v1600
      %v1624 = vadd.f32 %v1387, %v1600
      %v1625 = vadd.f32 %v1392, %v1600
      %v1626 = vadd.f32 %v1397, %v1600
      %v1627 = vadd.f32 %v1402, %v1600
      %v1628 = vadd.f32 %v1407, %v1600
      %v1629 = vadd.f32 %v1412, %v1600
      %v1630 = vadd.f32 %v1417, %v1600
      %v1631 = vadd.f32 %v1422, %v1600
      %v1632 = vadd.f32 %v1427, %v1600
      %v1633 = vadd.f32 %v1432, %v1600
      %v1634 = vadd.f32 %v1437, %v1600
      %v1635 = vadd.f32 %v1442, %v1600
      %v1636 = vadd.f32 %v1447, %v1600
      %v1637 = vadd.f32 %v1452, %v1600
      %v1638 = vadd.f32 %v1457, %v1600
      %v1639 = vadd.f32 %v1462, %v1600
      %v1640 = vadd.f32 %v1467, %v1600
      %v1641 = vadd.f32 %v1472, %v1600
      %v1642 = vadd.f32 %v1477, %v1600
      %v1643 = vadd.f32 %v1482, %v1600
      %v1644 = vadd.f32 %v1487, %v1600
      %v1645 = vadd.f32 %v1492, %v1600
      %v1646 = vadd.f32 %v1497, %v1600
      %v1647 = vadd.f32 %v1502, %v1600
      %v1648 = vadd.f32 %v1507, %v1600
      %v1649 = vadd.f32 %v1512, %v1600
      %v1650 = vadd.f32 %v1517, %v1600
      %v1651 = vadd.f32 %v1522, %v1600
      %v1652 = vadd.f32 %v1527, %v1600
      %v1653 = vadd.f32 %v1532, %v1600
      %v1654 = vadd.f32 %v1537, %v1600
      %v1655 = vadd.f32 %v1542, %v1600
      %v1656 = vadd.f32 %v1547, %v1600
      %v1657 = vadd.f32 %v1552, %v1600
      %v1658 = vadd.f32 %v1557, %v1600
      %v1659 = vadd.f32 %v1562, %v1600
      %v1660 = vadd.f32 %v1567, %v1600
      %v1661 = vadd.f32 %v1572, %v1600
      %v1662 = vadd.f32 %v1577, %v1600
      %v1663 = vadd.f32 %v1582, %v1600
      %v1664 = vadd.f32 %v1587, %v1600
      %v1665 = vadd.f32 %v1592, %v1600
      %v1666 = vtanh.pop %v1602
      %v1667 = vtanh.pop %v1603
      %v1668 = vtanh.pop %v1604
      %v1669 = vtanh.pop %v1605
      %v1670 = vtanh.pop %v1606
      %v1671 = vtanh.pop %v1607
      %v1672 = vtanh.pop %v1608
      %v1673 = vtanh.pop %v1609
      %v1674 = vtanh.pop %v1610
      %v1675 = vtanh.pop %v1611
      %v1676 = vtanh.pop %v1612
      %v1677 = vtanh.pop %v1613
      %v1678 = vtanh.pop %v1614
      %v1679 = vtanh.pop %v1615
      %v1680 = vtanh.pop %v1616
      %v1681 = vtanh.pop %v1617
      %v1682 = vtanh.pop %v1618
      %v1683 = vtanh.pop %v1619
      %v1684 = vtanh.pop %v1620
      %v1685 = vtanh.pop %v1621
      %v1686 = vtanh.pop %v1622
      %v1687 = vtanh.pop %v1623
      %v1688 = vtanh.pop %v1624
      %v1689 = vtanh.pop %v1625
      %v1690 = vtanh.pop %v1626
      %v1691 = vtanh.pop %v1627
      %v1692 = vtanh.pop %v1628
      %v1693 = vtanh.pop %v1629
      %v1694 = vtanh.pop %v1630
      %v1695 = vtanh.pop %v1631
      %v1696 = vtanh.pop %v1632
      %v1697 = vtanh.pop %v1633
      %v1698 = vtanh.pop %v1634
      %v1699 = vtanh.pop %v1635
      %v1700 = vtanh.pop %v1636
      %v1701 = vtanh.pop %v1637
      %v1702 = vtanh.pop %v1638
      %v1703 = vtanh.pop %v1639
      %v1704 = vtanh.pop %v1640
      %v1705 = vtanh.pop %v1641
      %v1706 = vtanh.pop %v1642
      %v1707 = vtanh.pop %v1643
      %v1708 = vtanh.pop %v1644
      %v1709 = vtanh.pop %v1645
      %v1710 = vtanh.pop %v1646
      %v1711 = vtanh.pop %v1647
      %v1712 = vtanh.pop %v1648
      %v1713 = vtanh.pop %v1649
      %v1714 = vtanh.pop %v1650
      %v1715 = vtanh.pop %v1651
      %v1716 = vtanh.pop %v1652
      %v1717 = vtanh.pop %v1653
      %v1718 = vtanh.pop %v1654
      %v1719 = vtanh.pop %v1655
      %v1720 = vtanh.pop %v1656
      %v1721 = vtanh.pop %v1657
      %v1722 = vtanh.pop %v1658
      %v1723 = vtanh.pop %v1659
      %v1724 = vtanh.pop %v1660
      %v1725 = vtanh.pop %v1661
      %v1726 = vtanh.pop %v1662
      %v1727 = vtanh.pop %v1663
      %v1728 = vtanh.pop %v1664
      %v1729 = vtanh.pop %v1665
      %v1730 = vld [vmem:[%s5] sm:$0xff]
      %v1731 = vld [vmem:[%s5 + $0x8] sm:$0xff]
      %v1732 = vld [vmem:[%s5 + $0x10] sm:$0xff]
      %v1733 = vld [vmem:[%s5 + $0x18] sm:$0xff]
      %v1734 = vld [vmem:[%s6] sm:$0x1]
      %v1736 = vlaneseq
      %v1737 = vshrl.u32 %v1736, 7
      %v1738 = vsub.s32 0, %v1737
      %v1739 = vrot.slane %v1734, %v1738
      %v1742 = vsel %vm440, %v1666, 0
      %v1745 = vsel %vm440, %v1667, 0
      %v1748 = vsel %vm440, %v1668, 0
      %v1751 = vsel %vm440, %v1669, 0
      %v1754 = vsel %vm440, %v1670, 0
      %v1757 = vsel %vm440, %v1671, 0
      %v1760 = vsel %vm440, %v1672, 0
      %v1763 = vsel %vm440, %v1673, 0
      %v1766 = vsel %vm440, %v1674, 0
      %v1769 = vsel %vm440, %v1675, 0
      %v1772 = vsel %vm440, %v1676, 0
      %v1775 = vsel %vm440, %v1677, 0
      %v1778 = vsel %vm440, %v1678, 0
      %v1781 = vsel %vm440, %v1679, 0
      %v1784 = vsel %vm440, %v1680, 0
      %v1787 = vsel %vm440, %v1681, 0
      %v1790 = vsel %vm440, %v1682, 0
      %v1793 = vsel %vm440, %v1683, 0
      %v1796 = vsel %vm440, %v1684, 0
      %v1799 = vsel %vm440, %v1685, 0
      %v1802 = vsel %vm440, %v1686, 0
      %v1805 = vsel %vm440, %v1687, 0
      %v1808 = vsel %vm440, %v1688, 0
      %v1811 = vsel %vm440, %v1689, 0
      %v1814 = vsel %vm440, %v1690, 0
      %v1817 = vsel %vm440, %v1691, 0
      %v1820 = vsel %vm440, %v1692, 0
      %v1823 = vsel %vm440, %v1693, 0
      %v1826 = vsel %vm440, %v1694, 0
      %v1829 = vsel %vm440, %v1695, 0
      %v1832 = vsel %vm440, %v1696, 0
      %v1835 = vsel %vm440, %v1697, 0
      %v1838 = vsel %vm440, %v1698, 0
      %v1841 = vsel %vm440, %v1699, 0
      %v1844 = vsel %vm440, %v1700, 0
      %v1847 = vsel %vm440, %v1701, 0
      %v1850 = vsel %vm440, %v1702, 0
      %v1853 = vsel %vm440, %v1703, 0
      %v1856 = vsel %vm440, %v1704, 0
      %v1859 = vsel %vm440, %v1705, 0
      %v1862 = vsel %vm440, %v1706, 0
      %v1865 = vsel %vm440, %v1707, 0
      %v1868 = vsel %vm440, %v1708, 0
      %v1871 = vsel %vm440, %v1709, 0
      %v1874 = vsel %vm440, %v1710, 0
      %v1877 = vsel %vm440, %v1711, 0
      %v1880 = vsel %vm440, %v1712, 0
      %v1883 = vsel %vm440, %v1713, 0
      %v1886 = vsel %vm440, %v1714, 0
      %v1889 = vsel %vm440, %v1715, 0
      %v1892 = vsel %vm440, %v1716, 0
      %v1895 = vsel %vm440, %v1717, 0
      %v1898 = vsel %vm440, %v1718, 0
      %v1901 = vsel %vm440, %v1719, 0
      %v1904 = vsel %vm440, %v1720, 0
      %v1907 = vsel %vm440, %v1721, 0
      %v1910 = vsel %vm440, %v1722, 0
      %v1913 = vsel %vm440, %v1723, 0
      %v1916 = vsel %vm440, %v1724, 0
      %v1919 = vsel %vm440, %v1725, 0
      %v1922 = vsel %vm440, %v1726, 0
      %v1925 = vsel %vm440, %v1727, 0
      %v1928 = vsel %vm440, %v1728, 0
      %v1931 = vsel %vm440, %v1729, 0
      %1933 = vmatprep.subr.mxu0 0.0
      %1934 = vmatpush1.msra.mxu0 %v1730
      %1935 = vmatprep.subr.mxu0 0.0
      %1936 = vmatpush1.msra.mxu0 %v1731
      %1937 = vmatprep.subr.mxu0 0.0
      %1938 = vmatpush1.msra.mxu0 %v1732
      %1939 = vmatprep.subr.mxu0 0.0
      %1940 = vmatpush1.msra.mxu0 %v1733
      %1941 = vmatprep.subr.mxu0 0.0
      %1942 = vmatpush1.msra.mxu0 0.0
      %1943 = vmatprep.subr.mxu0 0.0
      %1944 = vmatpush1.msra.mxu0 0.0
      %1945 = vmatprep.subr.mxu0 0.0
      %1946 = vmatpush1.msra.mxu0 0.0
      %1947 = vmatprep.subr.mxu0 0.0
      %1948 = vmatpush1.msra.mxu0 0.0
      %1949 = vmatprep.subr.mxu0 0.0
      %1950 = vmatpush1.msra.mxu0 0.0
      %1951 = vmatprep.subr.mxu0 0.0
      %1952 = vmatpush1.msra.mxu0 0.0
      %1953 = vmatprep.subr.mxu0 0.0
      %1954 = vmatpush1.msra.mxu0 0.0
      %1955 = vmatprep.subr.mxu0 0.0
      %1956 = vmatpush1.msra.mxu0 0.0
      %1957 = vmatprep.subr.mxu0 0.0
      %1958 = vmatpush1.msra.mxu0 0.0
      %1959 = vmatprep.subr.mxu0 0.0
      %1960 = vmatpush1.msra.mxu0 0.0
      %1961 = vmatprep.subr.mxu0 0.0
      %1962 = vmatpush1.msra.mxu0 0.0
      %1963 = vmatprep.subr.mxu0 0.0
      %1964 = vmatpush1.msra.mxu0 0.0
      %1965 = vmatprep.subr.mxu0 0.0
      %1966 = vmatpush1.msra.mxu0 0.0
      %1967 = vmatprep.subr.mxu0 0.0
      %1968 = vmatpush1.msra.mxu0 0.0
      %1969 = vmatprep.subr.mxu0 0.0
      %1970 = vmatpush1.msra.mxu0 0.0
      %1971 = vmatprep.subr.mxu0 0.0
      %1972 = vmatpush1.msra.mxu0 0.0
      %1973 = vmatprep.subr.mxu0 0.0
      %1974 = vmatpush1.msra.mxu0 0.0
      %1975 = vmatprep.subr.mxu0 0.0
      %1976 = vmatpush1.msra.mxu0 0.0
      %1977 = vmatprep.subr.mxu0 0.0
      %1978 = vmatpush1.msra.mxu0 0.0
      %1979 = vmatprep.subr.mxu0 0.0
      %1980 = vmatpush1.msra.mxu0 0.0
      %1981 = vmatprep.subr.mxu0 0.0
      %1982 = vmatpush1.msra.mxu0 0.0
      %1983 = vmatprep.subr.mxu0 0.0
      %1984 = vmatpush1.msra.mxu0 0.0
      %1985 = vmatprep.subr.mxu0 0.0
      %1986 = vmatpush1.msra.mxu0 0.0
      %1987 = vmatprep.subr.mxu0 0.0
      %1988 = vmatpush1.msra.mxu0 0.0
      %1989 = vmatprep.subr.mxu0 0.0
      %1990 = vmatpush1.msra.mxu0 0.0
      %1991 = vmatprep.subr.mxu0 0.0
      %1992 = vmatpush1.msra.mxu0 0.0
      %1993 = vmatprep.subr.mxu0 0.0
      %1994 = vmatpush1.msra.mxu0 0.0
      %1995 = vmatprep.subr.mxu0 0.0
      %1996 = vmatpush1.msra.mxu0 0.0
      %1997 = vmatprep.mubr.f32.mxu0 0.0
      %1998 = vmatmul.mubr.f32.gmra.mrb[0].mxu0 %v1742
      %v1999 = vpop.f32.mrb[0].mxu0
      %v2000 = vadd.f32 %v1739, %v1999
      %v2001 = vpop.f32.mrb[0].mxu0
      %2002 = vmatprep.mubr.f32.mxu0 0.0
      %2003 = vmatmul.mubr.f32.gmra.mrb[0].mxu0 %v1745
      %v2004 = vpop.f32.mrb[0].mxu0
      %v2005 = vadd.f32 %v1739, %v2004
      %v2006 = vpop.f32.mrb[0].mxu0
      %2007 = vmatprep.mubr.f32.mxu0 0.0
      %2008 = vmatmul.mubr.f32.gmra.mrb[0].mxu0 %v1748
      %v2009 = vpop.f32.mrb[0].mxu0
      %v2010 = vadd.f32 %v1739, %v2009
      %v2011 = vpop.f32.mrb[0].mxu0
      %2012 = vmatprep.mubr.f32.mxu0 0.0
      %2013 = vmatmul.mubr.f32.gmra.mrb[0].mxu0 %v1751
      %v2014 = vpop.f32.mrb[0].mxu0
      %v2015 = vadd.f32 %v1739, %v2014
      %v2016 = vpop.f32.mrb[0].mxu0
      %2017 = vmatprep.mubr.f32.mxu0 0.0
      %2018 = vmatmul.mubr.f32.gmra.mrb[0].mxu0 %v1754
      %v2019 = vpop.f32.mrb[0].mxu0
      %v2020 = vadd.f32 %v1739, %v2019
      %v2021 = vpop.f32.mrb[0].mxu0
      %2022 = vmatprep.mubr.f32.mxu0 0.0
      %2023 = vmatmul.mubr.f32.gmra.mrb[0].mxu0 %v1757
      %v2024 = vpop.f32.mrb[0].mxu0
      %v2025 = vadd.f32 %v1739, %v2024
      %v2026 = vpop.f32.mrb[0].mxu0
      %2027 = vmatprep.mubr.f32.mxu0 0.0
      %2028 = vmatmul.mubr.f32.gmra.mrb[0].mxu0 %v1760
      %v2029 = vpop.f32.mrb[0].mxu0
      %v2030 = vadd.f32 %v1739, %v2029
      %v2031 = vpop.f32.mrb[0].mxu0
      %2032 = vmatprep.mubr.f32.mxu0 0.0
      %2033 = vmatmul.mubr.f32.gmra.mrb[0].mxu0 %v1763
      %v2034 = vpop.f32.mrb[0].mxu0
      %v2035 = vadd.f32 %v1739, %v2034
      %v2036 = vpop.f32.mrb[0].mxu0
      %2037 = vmatprep.mubr.f32.mxu0 0.0
      %2038 = vmatmul.mubr.f32.gmra.mrb[0].mxu0 %v1766
      %v2039 = vpop.f32.mrb[0].mxu0
      %v2040 = vadd.f32 %v1739, %v2039
      %v2041 = vpop.f32.mrb[0].mxu0
      %2042 = vmatprep.mubr.f32.mxu0 0.0
      %2043 = vmatmul.mubr.f32.gmra.mrb[0].mxu0 %v1769
      %v2044 = vpop.f32.mrb[0].mxu0
      %v2045 = vadd.f32 %v1739, %v2044
      %v2046 = vpop.f32.mrb[0].mxu0
      %2047 = vmatprep.mubr.f32.mxu0 0.0
      %2048 = vmatmul.mubr.f32.gmra.mrb[0].mxu0 %v1772
      %v2049 = vpop.f32.mrb[0].mxu0
      %v2050 = vadd.f32 %v1739, %v2049
      %v2051 = vpop.f32.mrb[0].mxu0
      %2052 = vmatprep.mubr.f32.mxu0 0.0
      %2053 = vmatmul.mubr.f32.gmra.mrb[0].mxu0 %v1775
      %v2054 = vpop.f32.mrb[0].mxu0
      %v2055 = vadd.f32 %v1739, %v2054
      %v2056 = vpop.f32.mrb[0].mxu0
      %2057 = vmatprep.mubr.f32.mxu0 0.0
      %2058 = vmatmul.mubr.f32.gmra.mrb[0].mxu0 %v1778
      %v2059 = vpop.f32.mrb[0].mxu0
      %v2060 = vadd.f32 %v1739, %v2059
      %v2061 = vpop.f32.mrb[0].mxu0
      %2062 = vmatprep.mubr.f32.mxu0 0.0
      %2063 = vmatmul.mubr.f32.gmra.mrb[0].mxu0 %v1781
      %v2064 = vpop.f32.mrb[0].mxu0
      %v2065 = vadd.f32 %v1739, %v2064
      %v2066 = vpop.f32.mrb[0].mxu0
      %2067 = vmatprep.mubr.f32.mxu0 0.0
      %2068 = vmatmul.mubr.f32.gmra.mrb[0].mxu0 %v1784
      %v2069 = vpop.f32.mrb[0].mxu0
      %v2070 = vadd.f32 %v1739, %v2069
      %v2071 = vpop.f32.mrb[0].mxu0
      %2072 = vmatprep.mubr.f32.mxu0 0.0
      %2073 = vmatmul.mubr.f32.gmra.mrb[0].mxu0 %v1787
      %v2074 = vpop.f32.mrb[0].mxu0
      %v2075 = vadd.f32 %v1739, %v2074
      %v2076 = vpop.f32.mrb[0].mxu0
      %2077 = vmatprep.mubr.f32.mxu0 0.0
      %2078 = vmatmul.mubr.f32.gmra.mrb[0].mxu0 %v1790
      %v2079 = vpop.f32.mrb[0].mxu0
      %v2080 = vadd.f32 %v1739, %v2079
      %v2081 = vpop.f32.mrb[0].mxu0
      %2082 = vmatprep.mubr.f32.mxu0 0.0
      %2083 = vmatmul.mubr.f32.gmra.mrb[0].mxu0 %v1793
      %v2084 = vpop.f32.mrb[0].mxu0
      %v2085 = vadd.f32 %v1739, %v2084
      %v2086 = vpop.f32.mrb[0].mxu0
      %2087 = vmatprep.mubr.f32.mxu0 0.0
      %2088 = vmatmul.mubr.f32.gmra.mrb[0].mxu0 %v1796
      %v2089 = vpop.f32.mrb[0].mxu0
      %v2090 = vadd.f32 %v1739, %v2089
      %v2091 = vpop.f32.mrb[0].mxu0
      %2092 = vmatprep.mubr.f32.mxu0 0.0
      %2093 = vmatmul.mubr.f32.gmra.mrb[0].mxu0 %v1799
      %v2094 = vpop.f32.mrb[0].mxu0
      %v2095 = vadd.f32 %v1739, %v2094
      %v2096 = vpop.f32.mrb[0].mxu0
      %2097 = vmatprep.mubr.f32.mxu0 0.0
      %2098 = vmatmul.mubr.f32.gmra.mrb[0].mxu0 %v1802
      %v2099 = vpop.f32.mrb[0].mxu0
      %v2100 = vadd.f32 %v1739, %v2099
      %v2101 = vpop.f32.mrb[0].mxu0
      %2102 = vmatprep.mubr.f32.mxu0 0.0
      %2103 = vmatmul.mubr.f32.gmra.mrb[0].mxu0 %v1805
      %v2104 = vpop.f32.mrb[0].mxu0
      %v2105 = vadd.f32 %v1739, %v2104
      %v2106 = vpop.f32.mrb[0].mxu0
      %2107 = vmatprep.mubr.f32.mxu0 0.0
      %2108 = vmatmul.mubr.f32.gmra.mrb[0].mxu0 %v1808
      %v2109 = vpop.f32.mrb[0].mxu0
      %v2110 = vadd.f32 %v1739, %v2109
      %v2111 = vpop.f32.mrb[0].mxu0
      %2112 = vmatprep.mubr.f32.mxu0 0.0
      %2113 = vmatmul.mubr.f32.gmra.mrb[0].mxu0 %v1811
      %v2114 = vpop.f32.mrb[0].mxu0
      %v2115 = vadd.f32 %v1739, %v2114
      %v2116 = vpop.f32.mrb[0].mxu0
      %2117 = vmatprep.mubr.f32.mxu0 0.0
      %2118 = vmatmul.mubr.f32.gmra.mrb[0].mxu0 %v1814
      %v2119 = vpop.f32.mrb[0].mxu0
      %v2120 = vadd.f32 %v1739, %v2119
      %v2121 = vpop.f32.mrb[0].mxu0
      %2122 = vmatprep.mubr.f32.mxu0 0.0
      %2123 = vmatmul.mubr.f32.gmra.mrb[0].mxu0 %v1817
      %v2124 = vpop.f32.mrb[0].mxu0
      %v2125 = vadd.f32 %v1739, %v2124
      %v2126 = vpop.f32.mrb[0].mxu0
      %2127 = vmatprep.mubr.f32.mxu0 0.0
      %2128 = vmatmul.mubr.f32.gmra.mrb[0].mxu0 %v1820
      %v2129 = vpop.f32.mrb[0].mxu0
      %v2130 = vadd.f32 %v1739, %v2129
      %v2131 = vpop.f32.mrb[0].mxu0
      %2132 = vmatprep.mubr.f32.mxu0 0.0
      %2133 = vmatmul.mubr.f32.gmra.mrb[0].mxu0 %v1823
      %v2134 = vpop.f32.mrb[0].mxu0
      %v2135 = vadd.f32 %v1739, %v2134
      %v2136 = vpop.f32.mrb[0].mxu0
      %2137 = vmatprep.mubr.f32.mxu0 0.0
      %2138 = vmatmul.mubr.f32.gmra.mrb[0].mxu0 %v1826
      %v2139 = vpop.f32.mrb[0].mxu0
      %v2140 = vadd.f32 %v1739, %v2139
      %v2141 = vpop.f32.mrb[0].mxu0
      %2142 = vmatprep.mubr.f32.mxu0 0.0
      %2143 = vmatmul.mubr.f32.gmra.mrb[0].mxu0 %v1829
      %v2144 = vpop.f32.mrb[0].mxu0
      %v2145 = vadd.f32 %v1739, %v2144
      %v2146 = vpop.f32.mrb[0].mxu0
      %2147 = vmatprep.mubr.f32.mxu0 0.0
      %2148 = vmatmul.mubr.f32.gmra.mrb[0].mxu0 %v1832
      %v2149 = vpop.f32.mrb[0].mxu0
      %v2150 = vadd.f32 %v1739, %v2149
      %v2151 = vpop.f32.mrb[0].mxu0
      %2152 = vmatprep.mubr.f32.mxu0 0.0
      %2153 = vmatmul.mubr.f32.gmra.mrb[0].mxu0 %v1835
      %v2154 = vpop.f32.mrb[0].mxu0
      %v2155 = vadd.f32 %v1739, %v2154
      %v2156 = vpop.f32.mrb[0].mxu0
      %2157 = vmatprep.mubr.f32.mxu0 0.0
      %2158 = vmatmul.mubr.f32.gmra.mrb[0].mxu0 %v1838
      %v2159 = vpop.f32.mrb[0].mxu0
      %v2160 = vadd.f32 %v1739, %v2159
      %v2161 = vpop.f32.mrb[0].mxu0
      %2162 = vmatprep.mubr.f32.mxu0 0.0
      %2163 = vmatmul.mubr.f32.gmra.mrb[0].mxu0 %v1841
      %v2164 = vpop.f32.mrb[0].mxu0
      %v2165 = vadd.f32 %v1739, %v2164
      %v2166 = vpop.f32.mrb[0].mxu0
      %2167 = vmatprep.mubr.f32.mxu0 0.0
      %2168 = vmatmul.mubr.f32.gmra.mrb[0].mxu0 %v1844
      %v2169 = vpop.f32.mrb[0].mxu0
      %v2170 = vadd.f32 %v1739, %v2169
      %v2171 = vpop.f32.mrb[0].mxu0
      %2172 = vmatprep.mubr.f32.mxu0 0.0
      %2173 = vmatmul.mubr.f32.gmra.mrb[0].mxu0 %v1847
      %v2174 = vpop.f32.mrb[0].mxu0
      %v2175 = vadd.f32 %v1739, %v2174
      %v2176 = vpop.f32.mrb[0].mxu0
      %2177 = vmatprep.mubr.f32.mxu0 0.0
      %2178 = vmatmul.mubr.f32.gmra.mrb[0].mxu0 %v1850
      %v2179 = vpop.f32.mrb[0].mxu0
      %v2180 = vadd.f32 %v1739, %v2179
      %v2181 = vpop.f32.mrb[0].mxu0
      %2182 = vmatprep.mubr.f32.mxu0 0.0
      %2183 = vmatmul.mubr.f32.gmra.mrb[0].mxu0 %v1853
      %v2184 = vpop.f32.mrb[0].mxu0
      %v2185 = vadd.f32 %v1739, %v2184
      %v2186 = vpop.f32.mrb[0].mxu0
      %2187 = vmatprep.mubr.f32.mxu0 0.0
      %2188 = vmatmul.mubr.f32.gmra.mrb[0].mxu0 %v1856
      %v2189 = vpop.f32.mrb[0].mxu0
      %v2190 = vadd.f32 %v1739, %v2189
      %v2191 = vpop.f32.mrb[0].mxu0
      %2192 = vmatprep.mubr.f32.mxu0 0.0
      %2193 = vmatmul.mubr.f32.gmra.mrb[0].mxu0 %v1859
      %v2194 = vpop.f32.mrb[0].mxu0
      %v2195 = vadd.f32 %v1739, %v2194
      %v2196 = vpop.f32.mrb[0].mxu0
      %2197 = vmatprep.mubr.f32.mxu0 0.0
      %2198 = vmatmul.mubr.f32.gmra.mrb[0].mxu0 %v1862
      %v2199 = vpop.f32.mrb[0].mxu0
      %v2200 = vadd.f32 %v1739, %v2199
      %v2201 = vpop.f32.mrb[0].mxu0
      %2202 = vmatprep.mubr.f32.mxu0 0.0
      %2203 = vmatmul.mubr.f32.gmra.mrb[0].mxu0 %v1865
      %v2204 = vpop.f32.mrb[0].mxu0
      %v2205 = vadd.f32 %v1739, %v2204
      %v2206 = vpop.f32.mrb[0].mxu0
      %2207 = vmatprep.mubr.f32.mxu0 0.0
      %2208 = vmatmul.mubr.f32.gmra.mrb[0].mxu0 %v1868
      %v2209 = vpop.f32.mrb[0].mxu0
      %v2210 = vadd.f32 %v1739, %v2209
      %v2211 = vpop.f32.mrb[0].mxu0
      %2212 = vmatprep.mubr.f32.mxu0 0.0
      %2213 = vmatmul.mubr.f32.gmra.mrb[0].mxu0 %v1871
      %v2214 = vpop.f32.mrb[0].mxu0
      %v2215 = vadd.f32 %v1739, %v2214
      %v2216 = vpop.f32.mrb[0].mxu0
      %2217 = vmatprep.mubr.f32.mxu0 0.0
      %2218 = vmatmul.mubr.f32.gmra.mrb[0].mxu0 %v1874
      %v2219 = vpop.f32.mrb[0].mxu0
      %v2220 = vadd.f32 %v1739, %v2219
      %v2221 = vpop.f32.mrb[0].mxu0
      %2222 = vmatprep.mubr.f32.mxu0 0.0
      %2223 = vmatmul.mubr.f32.gmra.mrb[0].mxu0 %v1877
      %v2224 = vpop.f32.mrb[0].mxu0
      %v2225 = vadd.f32 %v1739, %v2224
      %v2226 = vpop.f32.mrb[0].mxu0
      %2227 = vmatprep.mubr.f32.mxu0 0.0
      %2228 = vmatmul.mubr.f32.gmra.mrb[0].mxu0 %v1880
      %v2229 = vpop.f32.mrb[0].mxu0
      %v2230 = vadd.f32 %v1739, %v2229
      %v2231 = vpop.f32.mrb[0].mxu0
      %2232 = vmatprep.mubr.f32.mxu0 0.0
      %2233 = vmatmul.mubr.f32.gmra.mrb[0].mxu0 %v1883
      %v2234 = vpop.f32.mrb[0].mxu0
      %v2235 = vadd.f32 %v1739, %v2234
      %v2236 = vpop.f32.mrb[0].mxu0
      %2237 = vmatprep.mubr.f32.mxu0 0.0
      %2238 = vmatmul.mubr.f32.gmra.mrb[0].mxu0 %v1886
      %v2239 = vpop.f32.mrb[0].mxu0
      %v2240 = vadd.f32 %v1739, %v2239
      %v2241 = vpop.f32.mrb[0].mxu0
      %2242 = vmatprep.mubr.f32.mxu0 0.0
      %2243 = vmatmul.mubr.f32.gmra.mrb[0].mxu0 %v1889
      %v2244 = vpop.f32.mrb[0].mxu0
      %v2245 = vadd.f32 %v1739, %v2244
      %v2246 = vpop.f32.mrb[0].mxu0
      %2247 = vmatprep.mubr.f32.mxu0 0.0
      %2248 = vmatmul.mubr.f32.gmra.mrb[0].mxu0 %v1892
      %v2249 = vpop.f32.mrb[0].mxu0
      %v2250 = vadd.f32 %v1739, %v2249
      %v2251 = vpop.f32.mrb[0].mxu0
      %2252 = vmatprep.mubr.f32.mxu0 0.0
      %2253 = vmatmul.mubr.f32.gmra.mrb[0].mxu0 %v1895
      %v2254 = vpop.f32.mrb[0].mxu0
      %v2255 = vadd.f32 %v1739, %v2254
      %v2256 = vpop.f32.mrb[0].mxu0
      %2257 = vmatprep.mubr.f32.mxu0 0.0
      %2258 = vmatmul.mubr.f32.gmra.mrb[0].mxu0 %v1898
      %v2259 = vpop.f32.mrb[0].mxu0
      %v2260 = vadd.f32 %v1739, %v2259
      %v2261 = vpop.f32.mrb[0].mxu0
      %2262 = vmatprep.mubr.f32.mxu0 0.0
      %2263 = vmatmul.mubr.f32.gmra.mrb[0].mxu0 %v1901
      %v2264 = vpop.f32.mrb[0].mxu0
      %v2265 = vadd.f32 %v1739, %v2264
      %v2266 = vpop.f32.mrb[0].mxu0
      %2267 = vmatprep.mubr.f32.mxu0 0.0
      %2268 = vmatmul.mubr.f32.gmra.mrb[0].mxu0 %v1904
      %v2269 = vpop.f32.mrb[0].mxu0
      %v2270 = vadd.f32 %v1739, %v2269
      %v2271 = vpop.f32.mrb[0].mxu0
      %2272 = vmatprep.mubr.f32.mxu0 0.0
      %2273 = vmatmul.mubr.f32.gmra.mrb[0].mxu0 %v1907
      %v2274 = vpop.f32.mrb[0].mxu0
      %v2275 = vadd.f32 %v1739, %v2274
      %v2276 = vpop.f32.mrb[0].mxu0
      %2277 = vmatprep.mubr.f32.mxu0 0.0
      %2278 = vmatmul.mubr.f32.gmra.mrb[0].mxu0 %v1910
      %v2279 = vpop.f32.mrb[0].mxu0
      %v2280 = vadd.f32 %v1739, %v2279
      %v2281 = vpop.f32.mrb[0].mxu0
      %2282 = vmatprep.mubr.f32.mxu0 0.0
      %2283 = vmatmul.mubr.f32.gmra.mrb[0].mxu0 %v1913
      %v2284 = vpop.f32.mrb[0].mxu0
      %v2285 = vadd.f32 %v1739, %v2284
      %v2286 = vpop.f32.mrb[0].mxu0
      %2287 = vmatprep.mubr.f32.mxu0 0.0
      %2288 = vmatmul.mubr.f32.gmra.mrb[0].mxu0 %v1916
      %v2289 = vpop.f32.mrb[0].mxu0
      %v2290 = vadd.f32 %v1739, %v2289
      %v2291 = vpop.f32.mrb[0].mxu0
      %2292 = vmatprep.mubr.f32.mxu0 0.0
      %2293 = vmatmul.mubr.f32.gmra.mrb[0].mxu0 %v1919
      %v2294 = vpop.f32.mrb[0].mxu0
      %v2295 = vadd.f32 %v1739, %v2294
      %v2296 = vpop.f32.mrb[0].mxu0
      %2297 = vmatprep.mubr.f32.mxu0 0.0
      %2298 = vmatmul.mubr.f32.gmra.mrb[0].mxu0 %v1922
      %v2299 = vpop.f32.mrb[0].mxu0
      %v2300 = vadd.f32 %v1739, %v2299
      %v2301 = vpop.f32.mrb[0].mxu0
      %2302 = vmatprep.mubr.f32.mxu0 0.0
      %2303 = vmatmul.mubr.f32.gmra.mrb[0].mxu0 %v1925
      %v2304 = vpop.f32.mrb[0].mxu0
      %v2305 = vadd.f32 %v1739, %v2304
      %v2306 = vpop.f32.mrb[0].mxu0
      %2307 = vmatprep.mubr.f32.mxu0 0.0
      %2308 = vmatmul.mubr.f32.gmra.mrb[0].mxu0 %v1928
      %v2309 = vpop.f32.mrb[0].mxu0
      %v2310 = vadd.f32 %v1739, %v2309
      %v2311 = vpop.f32.mrb[0].mxu0
      %2312 = vmatprep.mubr.f32.mxu0 0.0
      %2313 = vmatmul.mubr.f32.gmra.mrb[0].mxu0 %v1931
      %v2314 = vpop.f32.mrb[0].mxu0
      %v2315 = vadd.f32 %v1739, %v2314
      %v2316 = vpop.f32.mrb[0].mxu0
      %2317 = vdwg.mxu0
      %v2318 = vxor.u32 %v2000, 2147483648
      %v2319 = vxor.u32 %v2005, 2147483648
      %v2320 = vxor.u32 %v2010, 2147483648
      %v2321 = vxor.u32 %v2015, 2147483648
      %v2322 = vxor.u32 %v2020, 2147483648
      %v2323 = vxor.u32 %v2025, 2147483648
      %v2324 = vxor.u32 %v2030, 2147483648
      %v2325 = vxor.u32 %v2035, 2147483648
      %v2326 = vxor.u32 %v2040, 2147483648
      %v2327 = vxor.u32 %v2045, 2147483648
      %v2328 = vxor.u32 %v2050, 2147483648
      %v2329 = vxor.u32 %v2055, 2147483648
      %v2330 = vxor.u32 %v2060, 2147483648
      %v2331 = vxor.u32 %v2065, 2147483648
      %v2332 = vxor.u32 %v2070, 2147483648
      %v2333 = vxor.u32 %v2075, 2147483648
      %v2334 = vxor.u32 %v2080, 2147483648
      %v2335 = vxor.u32 %v2085, 2147483648
      %v2336 = vxor.u32 %v2090, 2147483648
      %v2337 = vxor.u32 %v2095, 2147483648
      %v2338 = vxor.u32 %v2100, 2147483648
      %v2339 = vxor.u32 %v2105, 2147483648
      %v2340 = vxor.u32 %v2110, 2147483648
      %v2341 = vxor.u32 %v2115, 2147483648
      %v2342 = vxor.u32 %v2120, 2147483648
      %v2343 = vxor.u32 %v2125, 2147483648
      %v2344 = vxor.u32 %v2130, 2147483648
      %v2345 = vxor.u32 %v2135, 2147483648
      %v2346 = vxor.u32 %v2140, 2147483648
      %v2347 = vxor.u32 %v2145, 2147483648
      %v2348 = vxor.u32 %v2150, 2147483648
      %v2349 = vxor.u32 %v2155, 2147483648
      %v2350 = vxor.u32 %v2160, 2147483648
      %v2351 = vxor.u32 %v2165, 2147483648
      %v2352 = vxor.u32 %v2170, 2147483648
      %v2353 = vxor.u32 %v2175, 2147483648
      %v2354 = vxor.u32 %v2180, 2147483648
      %v2355 = vxor.u32 %v2185, 2147483648
      %v2356 = vxor.u32 %v2190, 2147483648
      %v2357 = vxor.u32 %v2195, 2147483648
      %v2358 = vxor.u32 %v2200, 2147483648
      %v2359 = vxor.u32 %v2205, 2147483648
      %v2360 = vxor.u32 %v2210, 2147483648
      %v2361 = vxor.u32 %v2215, 2147483648
      %v2362 = vxor.u32 %v2220, 2147483648
      %v2363 = vxor.u32 %v2225, 2147483648
      %v2364 = vxor.u32 %v2230, 2147483648
      %v2365 = vxor.u32 %v2235, 2147483648
      %v2366 = vxor.u32 %v2240, 2147483648
      %v2367 = vxor.u32 %v2245, 2147483648
      %v2368 = vxor.u32 %v2250, 2147483648
      %v2369 = vxor.u32 %v2255, 2147483648
      %v2370 = vxor.u32 %v2260, 2147483648
      %v2371 = vxor.u32 %v2265, 2147483648
      %v2372 = vxor.u32 %v2270, 2147483648
      %v2373 = vxor.u32 %v2275, 2147483648
      %v2374 = vxor.u32 %v2280, 2147483648
      %v2375 = vxor.u32 %v2285, 2147483648
      %v2376 = vxor.u32 %v2290, 2147483648
      %v2377 = vxor.u32 %v2295, 2147483648
      %v2378 = vxor.u32 %v2300, 2147483648
      %v2379 = vxor.u32 %v2305, 2147483648
      %v2380 = vxor.u32 %v2310, 2147483648
      %v2381 = vxor.u32 %v2315, 2147483648
      %v2382 = vmul.f32 %v2318, 1.442695
      %v2383 = vpow.pop %v2382
      %v2384 = vmul.f32 %v2319, 1.442695
      %v2385 = vpow.pop %v2384
      %v2386 = vmul.f32 %v2320, 1.442695
      %v2387 = vpow.pop %v2386
      %v2388 = vmul.f32 %v2321, 1.442695
      %v2389 = vpow.pop %v2388
      %v2390 = vmul.f32 %v2322, 1.442695
      %v2391 = vpow.pop %v2390
      %v2392 = vmul.f32 %v2323, 1.442695
      %v2393 = vpow.pop %v2392
      %v2394 = vmul.f32 %v2324, 1.442695
      %v2395 = vpow.pop %v2394
      %v2396 = vmul.f32 %v2325, 1.442695
      %v2397 = vpow.pop %v2396
      %v2398 = vmul.f32 %v2326, 1.442695
      %v2399 = vpow.pop %v2398
      %v2400 = vmul.f32 %v2327, 1.442695
      %v2401 = vpow.pop %v2400
      %v2402 = vmul.f32 %v2328, 1.442695
      %v2403 = vpow.pop %v2402
      %v2404 = vmul.f32 %v2329, 1.442695
      %v2405 = vpow.pop %v2404
      %v2406 = vmul.f32 %v2330, 1.442695
      %v2407 = vpow.pop %v2406
      %v2408 = vmul.f32 %v2331, 1.442695
      %v2409 = vpow.pop %v2408
      %v2410 = vmul.f32 %v2332, 1.442695
      %v2411 = vpow.pop %v2410
      %v2412 = vmul.f32 %v2333, 1.442695
      %v2413 = vpow.pop %v2412
      %v2414 = vmul.f32 %v2334, 1.442695
      %v2415 = vpow.pop %v2414
      %v2416 = vmul.f32 %v2335, 1.442695
      %v2417 = vpow.pop %v2416
      %v2418 = vmul.f32 %v2336, 1.442695
      %v2419 = vpow.pop %v2418
      %v2420 = vmul.f32 %v2337, 1.442695
      %v2421 = vpow.pop %v2420
      %v2422 = vmul.f32 %v2338, 1.442695
      %v2423 = vpow.pop %v2422
      %v2424 = vmul.f32 %v2339, 1.442695
      %v2425 = vpow.pop %v2424
      %v2426 = vmul.f32 %v2340, 1.442695
      %v2427 = vpow.pop %v2426
      %v2428 = vmul.f32 %v2341, 1.442695
      %v2429 = vpow.pop %v2428
      %v2430 = vmul.f32 %v2342, 1.442695
      %v2431 = vpow.pop %v2430
      %v2432 = vmul.f32 %v2343, 1.442695
      %v2433 = vpow.pop %v2432
      %v2434 = vmul.f32 %v2344, 1.442695
      %v2435 = vpow.pop %v2434
      %v2436 = vmul.f32 %v2345, 1.442695
      %v2437 = vpow.pop %v2436
      %v2438 = vmul.f32 %v2346, 1.442695
      %v2439 = vpow.pop %v2438
      %v2440 = vmul.f32 %v2347, 1.442695
      %v2441 = vpow.pop %v2440
      %v2442 = vmul.f32 %v2348, 1.442695
      %v2443 = vpow.pop %v2442
      %v2444 = vmul.f32 %v2349, 1.442695
      %v2445 = vpow.pop %v2444
      %v2446 = vmul.f32 %v2350, 1.442695
      %v2447 = vpow.pop %v2446
      %v2448 = vmul.f32 %v2351, 1.442695
      %v2449 = vpow.pop %v2448
      %v2450 = vmul.f32 %v2352, 1.442695
      %v2451 = vpow.pop %v2450
      %v2452 = vmul.f32 %v2353, 1.442695
      %v2453 = vpow.pop %v2452
      %v2454 = vmul.f32 %v2354, 1.442695
      %v2455 = vpow.pop %v2454
      %v2456 = vmul.f32 %v2355, 1.442695
      %v2457 = vpow.pop %v2456
      %v2458 = vmul.f32 %v2356, 1.442695
      %v2459 = vpow.pop %v2458
      %v2460 = vmul.f32 %v2357, 1.442695
      %v2461 = vpow.pop %v2460
      %v2462 = vmul.f32 %v2358, 1.442695
      %v2463 = vpow.pop %v2462
      %v2464 = vmul.f32 %v2359, 1.442695
      %v2465 = vpow.pop %v2464
      %v2466 = vmul.f32 %v2360, 1.442695
      %v2467 = vpow.pop %v2466
      %v2468 = vmul.f32 %v2361, 1.442695
      %v2469 = vpow.pop %v2468
      %v2470 = vmul.f32 %v2362, 1.442695
      %v2471 = vpow.pop %v2470
      %v2472 = vmul.f32 %v2363, 1.442695
      %v2473 = vpow.pop %v2472
      %v2474 = vmul.f32 %v2364, 1.442695
      %v2475 = vpow.pop %v2474
      %v2476 = vmul.f32 %v2365, 1.442695
      %v2477 = vpow.pop %v2476
      %v2478 = vmul.f32 %v2366, 1.442695
      %v2479 = vpow.pop %v2478
      %v2480 = vmul.f32 %v2367, 1.442695
      %v2481 = vpow.pop %v2480
      %v2482 = vmul.f32 %v2368, 1.442695
      %v2483 = vpow.pop %v2482
      %v2484 = vmul.f32 %v2369, 1.442695
      %v2485 = vpow.pop %v2484
      %v2486 = vmul.f32 %v2370, 1.442695
      %v2487 = vpow.pop %v2486
      %v2488 = vmul.f32 %v2371, 1.442695
      %v2489 = vpow.pop %v2488
      %v2490 = vmul.f32 %v2372, 1.442695
      %v2491 = vpow.pop %v2490
      %v2492 = vmul.f32 %v2373, 1.442695
      %v2493 = vpow.pop %v2492
      %v2494 = vmul.f32 %v2374, 1.442695
      %v2495 = vpow.pop %v2494
      %v2496 = vmul.f32 %v2375, 1.442695
      %v2497 = vpow.pop %v2496
      %v2498 = vmul.f32 %v2376, 1.442695
      %v2499 = vpow.pop %v2498
      %v2500 = vmul.f32 %v2377, 1.442695
      %v2501 = vpow.pop %v2500
      %v2502 = vmul.f32 %v2378, 1.442695
      %v2503 = vpow.pop %v2502
      %v2504 = vmul.f32 %v2379, 1.442695
      %v2505 = vpow.pop %v2504
      %v2506 = vmul.f32 %v2380, 1.442695
      %v2507 = vpow.pop %v2506
      %v2508 = vmul.f32 %v2381, 1.442695
      %v2509 = vpow.pop %v2508
      %v2510 = vadd.f32 %v2383, 1.0
      %v2511 = vadd.f32 %v2385, 1.0
      %v2512 = vadd.f32 %v2387, 1.0
      %v2513 = vadd.f32 %v2389, 1.0
      %v2514 = vadd.f32 %v2391, 1.0
      %v2515 = vadd.f32 %v2393, 1.0
      %v2516 = vadd.f32 %v2395, 1.0
      %v2517 = vadd.f32 %v2397, 1.0
      %v2518 = vadd.f32 %v2399, 1.0
      %v2519 = vadd.f32 %v2401, 1.0
      %v2520 = vadd.f32 %v2403, 1.0
      %v2521 = vadd.f32 %v2405, 1.0
      %v2522 = vadd.f32 %v2407, 1.0
      %v2523 = vadd.f32 %v2409, 1.0
      %v2524 = vadd.f32 %v2411, 1.0
      %v2525 = vadd.f32 %v2413, 1.0
      %v2526 = vadd.f32 %v2415, 1.0
      %v2527 = vadd.f32 %v2417, 1.0
      %v2528 = vadd.f32 %v2419, 1.0
      %v2529 = vadd.f32 %v2421, 1.0
      %v2530 = vadd.f32 %v2423, 1.0
      %v2531 = vadd.f32 %v2425, 1.0
      %v2532 = vadd.f32 %v2427, 1.0
      %v2533 = vadd.f32 %v2429, 1.0
      %v2534 = vadd.f32 %v2431, 1.0
      %v2535 = vadd.f32 %v2433, 1.0
      %v2536 = vadd.f32 %v2435, 1.0
      %v2537 = vadd.f32 %v2437, 1.0
      %v2538 = vadd.f32 %v2439, 1.0
      %v2539 = vadd.f32 %v2441, 1.0
      %v2540 = vadd.f32 %v2443, 1.0
      %v2541 = vadd.f32 %v2445, 1.0
      %v2542 = vadd.f32 %v2447, 1.0
      %v2543 = vadd.f32 %v2449, 1.0
      %v2544 = vadd.f32 %v2451, 1.0
      %v2545 = vadd.f32 %v2453, 1.0
      %v2546 = vadd.f32 %v2455, 1.0
      %v2547 = vadd.f32 %v2457, 1.0
      %v2548 = vadd.f32 %v2459, 1.0
      %v2549 = vadd.f32 %v2461, 1.0
      %v2550 = vadd.f32 %v2463, 1.0
      %v2551 = vadd.f32 %v2465, 1.0
      %v2552 = vadd.f32 %v2467, 1.0
      %v2553 = vadd.f32 %v2469, 1.0
      %v2554 = vadd.f32 %v2471, 1.0
      %v2555 = vadd.f32 %v2473, 1.0
      %v2556 = vadd.f32 %v2475, 1.0
      %v2557 = vadd.f32 %v2477, 1.0
      %v2558 = vadd.f32 %v2479, 1.0
      %v2559 = vadd.f32 %v2481, 1.0
      %v2560 = vadd.f32 %v2483, 1.0
      %v2561 = vadd.f32 %v2485, 1.0
      %v2562 = vadd.f32 %v2487, 1.0
      %v2563 = vadd.f32 %v2489, 1.0
      %v2564 = vadd.f32 %v2491, 1.0
      %v2565 = vadd.f32 %v2493, 1.0
      %v2566 = vadd.f32 %v2495, 1.0
      %v2567 = vadd.f32 %v2497, 1.0
      %v2568 = vadd.f32 %v2499, 1.0
      %v2569 = vadd.f32 %v2501, 1.0
      %v2570 = vadd.f32 %v2503, 1.0
      %v2571 = vadd.f32 %v2505, 1.0
      %v2572 = vadd.f32 %v2507, 1.0
      %v2573 = vadd.f32 %v2509, 1.0
      %v2574 = vrcp.pop %v2510
      %v2575 = vmul.f32 1.0, %v2574
      %v2576 = vrcp.pop %v2511
      %v2577 = vmul.f32 1.0, %v2576
      %v2578 = vrcp.pop %v2512
      %v2579 = vmul.f32 1.0, %v2578
      %v2580 = vrcp.pop %v2513
      %v2581 = vmul.f32 1.0, %v2580
      %v2582 = vrcp.pop %v2514
      %v2583 = vmul.f32 1.0, %v2582
      %v2584 = vrcp.pop %v2515
      %v2585 = vmul.f32 1.0, %v2584
      %v2586 = vrcp.pop %v2516
      %v2587 = vmul.f32 1.0, %v2586
      %v2588 = vrcp.pop %v2517
      %v2589 = vmul.f32 1.0, %v2588
      %v2590 = vrcp.pop %v2518
      %v2591 = vmul.f32 1.0, %v2590
      %v2592 = vrcp.pop %v2519
      %v2593 = vmul.f32 1.0, %v2592
      %v2594 = vrcp.pop %v2520
      %v2595 = vmul.f32 1.0, %v2594
      %v2596 = vrcp.pop %v2521
      %v2597 = vmul.f32 1.0, %v2596
      %v2598 = vrcp.pop %v2522
      %v2599 = vmul.f32 1.0, %v2598
      %v2600 = vrcp.pop %v2523
      %v2601 = vmul.f32 1.0, %v2600
      %v2602 = vrcp.pop %v2524
      %v2603 = vmul.f32 1.0, %v2602
      %v2604 = vrcp.pop %v2525
      %v2605 = vmul.f32 1.0, %v2604
      %v2606 = vrcp.pop %v2526
      %v2607 = vmul.f32 1.0, %v2606
      %v2608 = vrcp.pop %v2527
      %v2609 = vmul.f32 1.0, %v2608
      %v2610 = vrcp.pop %v2528
      %v2611 = vmul.f32 1.0, %v2610
      %v2612 = vrcp.pop %v2529
      %v2613 = vmul.f32 1.0, %v2612
      %v2614 = vrcp.pop %v2530
      %v2615 = vmul.f32 1.0, %v2614
      %v2616 = vrcp.pop %v2531
      %v2617 = vmul.f32 1.0, %v2616
      %v2618 = vrcp.pop %v2532
      %v2619 = vmul.f32 1.0, %v2618
      %v2620 = vrcp.pop %v2533
      %v2621 = vmul.f32 1.0, %v2620
      %v2622 = vrcp.pop %v2534
      %v2623 = vmul.f32 1.0, %v2622
      %v2624 = vrcp.pop %v2535
      %v2625 = vmul.f32 1.0, %v2624
      %v2626 = vrcp.pop %v2536
      %v2627 = vmul.f32 1.0, %v2626
      %v2628 = vrcp.pop %v2537
      %v2629 = vmul.f32 1.0, %v2628
      %v2630 = vrcp.pop %v2538
      %v2631 = vmul.f32 1.0, %v2630
      %v2632 = vrcp.pop %v2539
      %v2633 = vmul.f32 1.0, %v2632
      %v2634 = vrcp.pop %v2540
      %v2635 = vmul.f32 1.0, %v2634
      %v2636 = vrcp.pop %v2541
      %v2637 = vmul.f32 1.0, %v2636
      %v2638 = vrcp.pop %v2542
      %v2639 = vmul.f32 1.0, %v2638
      %v2640 = vrcp.pop %v2543
      %v2641 = vmul.f32 1.0, %v2640
      %v2642 = vrcp.pop %v2544
      %v2643 = vmul.f32 1.0, %v2642
      %v2644 = vrcp.pop %v2545
      %v2645 = vmul.f32 1.0, %v2644
      %v2646 = vrcp.pop %v2546
      %v2647 = vmul.f32 1.0, %v2646
      %v2648 = vrcp.pop %v2547
      %v2649 = vmul.f32 1.0, %v2648
      %v2650 = vrcp.pop %v2548
      %v2651 = vmul.f32 1.0, %v2650
      %v2652 = vrcp.pop %v2549
      %v2653 = vmul.f32 1.0, %v2652
      %v2654 = vrcp.pop %v2550
      %v2655 = vmul.f32 1.0, %v2654
      %v2656 = vrcp.pop %v2551
      %v2657 = vmul.f32 1.0, %v2656
      %v2658 = vrcp.pop %v2552
      %v2659 = vmul.f32 1.0, %v2658
      %v2660 = vrcp.pop %v2553
      %v2661 = vmul.f32 1.0, %v2660
      %v2662 = vrcp.pop %v2554
      %v2663 = vmul.f32 1.0, %v2662
      %v2664 = vrcp.pop %v2555
      %v2665 = vmul.f32 1.0, %v2664
      %v2666 = vrcp.pop %v2556
      %v2667 = vmul.f32 1.0, %v2666
      %v2668 = vrcp.pop %v2557
      %v2669 = vmul.f32 1.0, %v2668
      %v2670 = vrcp.pop %v2558
      %v2671 = vmul.f32 1.0, %v2670
      %v2672 = vrcp.pop %v2559
      %v2673 = vmul.f32 1.0, %v2672
      %v2674 = vrcp.pop %v2560
      %v2675 = vmul.f32 1.0, %v2674
      %v2676 = vrcp.pop %v2561
      %v2677 = vmul.f32 1.0, %v2676
      %v2678 = vrcp.pop %v2562
      %v2679 = vmul.f32 1.0, %v2678
      %v2680 = vrcp.pop %v2563
      %v2681 = vmul.f32 1.0, %v2680
      %v2682 = vrcp.pop %v2564
      %v2683 = vmul.f32 1.0, %v2682
      %v2684 = vrcp.pop %v2565
      %v2685 = vmul.f32 1.0, %v2684
      %v2686 = vrcp.pop %v2566
      %v2687 = vmul.f32 1.0, %v2686
      %v2688 = vrcp.pop %v2567
      %v2689 = vmul.f32 1.0, %v2688
      %v2690 = vrcp.pop %v2568
      %v2691 = vmul.f32 1.0, %v2690
      %v2692 = vrcp.pop %v2569
      %v2693 = vmul.f32 1.0, %v2692
      %v2694 = vrcp.pop %v2570
      %v2695 = vmul.f32 1.0, %v2694
      %v2696 = vrcp.pop %v2571
      %v2697 = vmul.f32 1.0, %v2696
      %v2698 = vrcp.pop %v2572
      %v2699 = vmul.f32 1.0, %v2698
      %v2700 = vrcp.pop %v2573
      %v2701 = vmul.f32 1.0, %v2700
      %v2702 = vadd.f32 %v2575, 0.0
      %v2703 = vadd.f32 %v2577, 0.0
      %v2704 = vadd.f32 %v2579, 0.0
      %v2705 = vadd.f32 %v2581, 0.0
      %v2706 = vadd.f32 %v2583, 0.0
      %v2707 = vadd.f32 %v2585, 0.0
      %v2708 = vadd.f32 %v2587, 0.0
      %v2709 = vadd.f32 %v2589, 0.0
      %v2710 = vadd.f32 %v2591, 0.0
      %v2711 = vadd.f32 %v2593, 0.0
      %v2712 = vadd.f32 %v2595, 0.0
      %v2713 = vadd.f32 %v2597, 0.0
      %v2714 = vadd.f32 %v2599, 0.0
      %v2715 = vadd.f32 %v2601, 0.0
      %v2716 = vadd.f32 %v2603, 0.0
      %v2717 = vadd.f32 %v2605, 0.0
      %v2718 = vadd.f32 %v2607, 0.0
      %v2719 = vadd.f32 %v2609, 0.0
      %v2720 = vadd.f32 %v2611, 0.0
      %v2721 = vadd.f32 %v2613, 0.0
      %v2722 = vadd.f32 %v2615, 0.0
      %v2723 = vadd.f32 %v2617, 0.0
      %v2724 = vadd.f32 %v2619, 0.0
      %v2725 = vadd.f32 %v2621, 0.0
      %v2726 = vadd.f32 %v2623, 0.0
      %v2727 = vadd.f32 %v2625, 0.0
      %v2728 = vadd.f32 %v2627, 0.0
      %v2729 = vadd.f32 %v2629, 0.0
      %v2730 = vadd.f32 %v2631, 0.0
      %v2731 = vadd.f32 %v2633, 0.0
      %v2732 = vadd.f32 %v2635, 0.0
      %v2733 = vadd.f32 %v2637, 0.0
      %v2734 = vadd.f32 %v2639, 0.0
      %v2735 = vadd.f32 %v2641, 0.0
      %v2736 = vadd.f32 %v2643, 0.0
      %v2737 = vadd.f32 %v2645, 0.0
      %v2738 = vadd.f32 %v2647, 0.0
      %v2739 = vadd.f32 %v2649, 0.0
      %v2740 = vadd.f32 %v2651, 0.0
      %v2741 = vadd.f32 %v2653, 0.0
      %v2742 = vadd.f32 %v2655, 0.0
      %v2743 = vadd.f32 %v2657, 0.0
      %v2744 = vadd.f32 %v2659, 0.0
      %v2745 = vadd.f32 %v2661, 0.0
      %v2746 = vadd.f32 %v2663, 0.0
      %v2747 = vadd.f32 %v2665, 0.0
      %v2748 = vadd.f32 %v2667, 0.0
      %v2749 = vadd.f32 %v2669, 0.0
      %v2750 = vadd.f32 %v2671, 0.0
      %v2751 = vadd.f32 %v2673, 0.0
      %v2752 = vadd.f32 %v2675, 0.0
      %v2753 = vadd.f32 %v2677, 0.0
      %v2754 = vadd.f32 %v2679, 0.0
      %v2755 = vadd.f32 %v2681, 0.0
      %v2756 = vadd.f32 %v2683, 0.0
      %v2757 = vadd.f32 %v2685, 0.0
      %v2758 = vadd.f32 %v2687, 0.0
      %v2759 = vadd.f32 %v2689, 0.0
      %v2760 = vadd.f32 %v2691, 0.0
      %v2761 = vadd.f32 %v2693, 0.0
      %v2762 = vadd.f32 %v2695, 0.0
      %v2763 = vadd.f32 %v2697, 0.0
      %v2764 = vadd.f32 %v2699, 0.0
      %v2765 = vadd.f32 %v2701, 0.0
      %vm2766 = vcmask 15360
      %2767 = vst.msk [vmem:[%s302] sm:$0xff] %vm2766, %v2702
      %2768 = vst.msk [vmem:[%s302 + $0x8] sm:$0xff] %vm2766, %v2703
      %2769 = vst.msk [vmem:[%s302 + $0x10] sm:$0xff] %vm2766, %v2704
      %2770 = vst.msk [vmem:[%s302 + $0x18] sm:$0xff] %vm2766, %v2705
      %2771 = vst.msk [vmem:[%s302 + $0x20] sm:$0xff] %vm2766, %v2706
      %2772 = vst.msk [vmem:[%s302 + $0x28] sm:$0xff] %vm2766, %v2707
      %2773 = vst.msk [vmem:[%s302 + $0x30] sm:$0xff] %vm2766, %v2708
      %2774 = vst.msk [vmem:[%s302 + $0x38] sm:$0xff] %vm2766, %v2709
      %2775 = vst.msk [vmem:[%s302 + $0x40] sm:$0xff] %vm2766, %v2710
      %2776 = vst.msk [vmem:[%s302 + $0x48] sm:$0xff] %vm2766, %v2711
      %2777 = vst.msk [vmem:[%s302 + $0x50] sm:$0xff] %vm2766, %v2712
      %2778 = vst.msk [vmem:[%s302 + $0x58] sm:$0xff] %vm2766, %v2713
      %2779 = vst.msk [vmem:[%s302 + $0x60] sm:$0xff] %vm2766, %v2714
      %2780 = vst.msk [vmem:[%s302 + $0x68] sm:$0xff] %vm2766, %v2715
      %2781 = vst.msk [vmem:[%s302 + $0x70] sm:$0xff] %vm2766, %v2716
      %2782 = vst.msk [vmem:[%s302 + $0x78] sm:$0xff] %vm2766, %v2717
      %2783 = vst.msk [vmem:[%s302 + $0x80] sm:$0xff] %vm2766, %v2718
      %2784 = vst.msk [vmem:[%s302 + $0x88] sm:$0xff] %vm2766, %v2719
      %2785 = vst.msk [vmem:[%s302 + $0x90] sm:$0xff] %vm2766, %v2720
      %2786 = vst.msk [vmem:[%s302 + $0x98] sm:$0xff] %vm2766, %v2721
      %2787 = vst.msk [vmem:[%s302 + $0xa0] sm:$0xff] %vm2766, %v2722
      %2788 = vst.msk [vmem:[%s302 + $0xa8] sm:$0xff] %vm2766, %v2723
      %2789 = vst.msk [vmem:[%s302 + $0xb0] sm:$0xff] %vm2766, %v2724
      %2790 = vst.msk [vmem:[%s302 + $0xb8] sm:$0xff] %vm2766, %v2725
      %2791 = vst.msk [vmem:[%s302 + $0xc0] sm:$0xff] %vm2766, %v2726
      %2792 = vst.msk [vmem:[%s302 + $0xc8] sm:$0xff] %vm2766, %v2727
      %2793 = vst.msk [vmem:[%s302 + $0xd0] sm:$0xff] %vm2766, %v2728
      %2794 = vst.msk [vmem:[%s302 + $0xd8] sm:$0xff] %vm2766, %v2729
      %2795 = vst.msk [vmem:[%s302 + $0xe0] sm:$0xff] %vm2766, %v2730
      %2796 = vst.msk [vmem:[%s302 + $0xe8] sm:$0xff] %vm2766, %v2731
      %2797 = vst.msk [vmem:[%s302 + $0xf0] sm:$0xff] %vm2766, %v2732
      %2798 = vst.msk [vmem:[%s302 + $0xf8] sm:$0xff] %vm2766, %v2733
      %2799 = vst.msk [vmem:[%s302 + $0x100] sm:$0xff] %vm2766, %v2734
      %2800 = vst.msk [vmem:[%s302 + $0x108] sm:$0xff] %vm2766, %v2735
      %2801 = vst.msk [vmem:[%s302 + $0x110] sm:$0xff] %vm2766, %v2736
      %2802 = vst.msk [vmem:[%s302 + $0x118] sm:$0xff] %vm2766, %v2737
      %2803 = vst.msk [vmem:[%s302 + $0x120] sm:$0xff] %vm2766, %v2738
      %2804 = vst.msk [vmem:[%s302 + $0x128] sm:$0xff] %vm2766, %v2739
      %2805 = vst.msk [vmem:[%s302 + $0x130] sm:$0xff] %vm2766, %v2740
      %2806 = vst.msk [vmem:[%s302 + $0x138] sm:$0xff] %vm2766, %v2741
      %2807 = vst.msk [vmem:[%s302 + $0x140] sm:$0xff] %vm2766, %v2742
      %2808 = vst.msk [vmem:[%s302 + $0x148] sm:$0xff] %vm2766, %v2743
      %2809 = vst.msk [vmem:[%s302 + $0x150] sm:$0xff] %vm2766, %v2744
      %2810 = vst.msk [vmem:[%s302 + $0x158] sm:$0xff] %vm2766, %v2745
      %2811 = vst.msk [vmem:[%s302 + $0x160] sm:$0xff] %vm2766, %v2746
      %2812 = vst.msk [vmem:[%s302 + $0x168] sm:$0xff] %vm2766, %v2747
      %2813 = vst.msk [vmem:[%s302 + $0x170] sm:$0xff] %vm2766, %v2748
      %2814 = vst.msk [vmem:[%s302 + $0x178] sm:$0xff] %vm2766, %v2749
      %2815 = vst.msk [vmem:[%s302 + $0x180] sm:$0xff] %vm2766, %v2750
      %2816 = vst.msk [vmem:[%s302 + $0x188] sm:$0xff] %vm2766, %v2751
      %2817 = vst.msk [vmem:[%s302 + $0x190] sm:$0xff] %vm2766, %v2752
      %2818 = vst.msk [vmem:[%s302 + $0x198] sm:$0xff] %vm2766, %v2753
      %2819 = vst.msk [vmem:[%s302 + $0x1a0] sm:$0xff] %vm2766, %v2754
      %2820 = vst.msk [vmem:[%s302 + $0x1a8] sm:$0xff] %vm2766, %v2755
      %2821 = vst.msk [vmem:[%s302 + $0x1b0] sm:$0xff] %vm2766, %v2756
      %2822 = vst.msk [vmem:[%s302 + $0x1b8] sm:$0xff] %vm2766, %v2757
      %2823 = vst.msk [vmem:[%s302 + $0x1c0] sm:$0xff] %vm2766, %v2758
      %2824 = vst.msk [vmem:[%s302 + $0x1c8] sm:$0xff] %vm2766, %v2759
      %2825 = vst.msk [vmem:[%s302 + $0x1d0] sm:$0xff] %vm2766, %v2760
      %2826 = vst.msk [vmem:[%s302 + $0x1d8] sm:$0xff] %vm2766, %v2761
      %2827 = vst.msk [vmem:[%s302 + $0x1e0] sm:$0xff] %vm2766, %v2762
      %2828 = vst.msk [vmem:[%s302 + $0x1e8] sm:$0xff] %vm2766, %v2763
      %2829 = vst.msk [vmem:[%s302 + $0x1f0] sm:$0xff] %vm2766, %v2764
      %2830 = vst.msk [vmem:[%s302 + $0x1f8] sm:$0xff] %vm2766, %v2765
      %s2831 = smul.u32 64, %s18
      %p2832 = scmp.lt.s32.totalorder %s2831, 127
      %s2833 = scalar_select %p2832, %s2831, 127
      %s2834 = smul.addr %s2833, 8
      %s2835 = scalar_lea.vmem %s7, %s2834
      // Predicated region
      $region49: #{tpu_custom_call.1} parent=47 // pred_check
        %p2836 = pneg %p193
      $region50: #{tpu_custom_call.1} parent=47 // pred_check_branch
        %2838 = sbr.rel (%p2836) target = $region52
      $region51: #{tpu_custom_call.1} parent=47 // pred_region
        %s2839 = smul.u32 64, %s18
      $region52: #{tpu_custom_call.1} parent=47 // pred_fallthru
        _
    $region48: #{tpu_custom_call.1} parent=5 // pred_fallthru
      _
    %p2840 = scmp.le.s32.totalorder 2, %s13
    // Predicated region
    $region53: #{tpu_custom_call.1} parent=5 // pred_check
      %p2841 = pneg %p2840
    $region54: #{tpu_custom_call.1} parent=5 // pred_check_branch
      %2843 = sbr.rel (%p2841) target = $region56
    $region55: #{tpu_custom_call.1} parent=5 // pred_region
      %s2844 = ssub.s32 %s13, 2
      // Predicated region
      $region57: #{tpu_custom_call.1} parent=55 // pred_check
        %p2845 = pneg %p199
      $region58: #{tpu_custom_call.1} parent=55 // pred_check_branch
        %2847 = sbr.rel (%p2845) target = $region60
      $region59: #{tpu_custom_call.1} parent=55 // pred_region
        %s2848 = smul.u32 64, %s19
        %p2849 = scmp.lt.s32.totalorder %s2848, 127
        %s2850 = scalar_select %p2849, %s2848, 127
        %s2851 = smul.addr %s2850, 8
        %s2852 = scalar_lea.vmem %s7, %s2851
      $region60: #{tpu_custom_call.1} parent=55 // pred_fallthru
        _
    $region56: #{tpu_custom_call.1} parent=5 // pred_fallthru
      _
  $region6: #{tpu_custom_call.1} parent=0 // loop_footer
    %s17 = sadd.s32 1, %s13
  $region7: #{tpu_custom_call.1} parent=0 // loop_footer_branch
    %12 = sbr.rel target = $region3
  $region8: #{tpu_custom_call.1} parent=0 // loop_exit
    _

</llo_original>
